<compile_context>
chip_gen: v6e
topology: v6e:2x2x1
jax: 0.10.0
libtpu: 0.0.40
codegen_flags: <defaults>
</compile_context>

<pallas_src>
import functools

import jax
import jax.numpy as jnp
from jax.experimental import pallas as pl
from jax.experimental.pallas import tpu as pltpu

VMEM_LIMIT_BYTES = 40 * 1024 * 1024   # < 64 MiB (v7x physical); well within v5e/v6e's 128 MiB
LN_EPS = 1e-5


def _round_up(v, m):
    return ((v + m - 1) // m) * m


def _pick_tile_m(n):
    """Target-row tile: prefer 256-512 with an even tile count (megacore-friendly)."""
    for t in (512, 256, 128):
        if n % t == 0 and (n // t) % 2 == 0:
            return t
    for t in (512, 256, 128):
        if n % t == 0:
            return t
    return n


def _pick_tile_k(n):
    """Source (reduction) tile."""
    for t in (512, 256, 128):
        if n % t == 0:
            return t
    return n


# ------------------------------------------------------------------ layer-0 source transform
# Hs = (deg^-1/2 . X) @ W     (bf16 output; source-side GCN normalization folded in here)

def transform_kernel(x_ref, dinv_ref, w_ref, hs_ref):
    xs = x_ref[...].astype(jnp.float32) * dinv_ref[...]
    hs_ref[...] = jnp.dot(xs.astype(jnp.bfloat16), w_ref[...],
                          preferred_element_type=jnp.float32).astype(hs_ref.dtype)


def gcn_transform(x_p, dinv, w):
    np_, cin_p = x_p.shape
    hp = w.shape[1]
    tr = _pick_tile_m(np_)
    return pl.pallas_call(
        transform_kernel,
        out_shape=jax.ShapeDtypeStruct((np_, hp), jnp.bfloat16),
        grid_spec=pltpu.PrefetchScalarGridSpec(
            num_scalar_prefetch=0,
            grid=(np_ // tr,),
            in_specs=[
                pl.BlockSpec((tr, cin_p), lambda i: (i, 0)),   # X rows
                pl.BlockSpec((tr, 1),     lambda i: (i, 0)),   # deg^-1/2 rows
                pl.BlockSpec((cin_p, hp), lambda i: (0, 0)),   # W0 (bf16)
            ],
            out_specs=pl.BlockSpec((tr, hp), lambda i: (i, 0)),
        ),
        compiler_params=pltpu.CompilerParams(
            dimension_semantics=("parallel",),
            vmem_limit_bytes=VMEM_LIMIT_BYTES,
        ),
    )(x_p, dinv, w)


# ------------------------------------------------------------------ layer 0 (conv -> ReLU -> LN)
# Inner loop: acc += adj_tile @ Hs0_tile  (pure bf16 MXU + DMA).
# Final-k epilogue: self-loop + target scaling + bias, ReLU, LayerNorm, and directly emits
# layer 1's source transform Hs1 = (deg^-1/2 . LN(ReLU(y))) @ W1 in bf16.

def layer0_kernel(adj_ref, hs_src_ref, hs_tgt_ref, drow_ref, b_ref, g_ref, beta_ref, w1_ref,
                  hs1_ref, acc_ref, *, h_true):
    k = pl.program_id(1)

    @pl.when(k == 0)
    def _():
        acc_ref[...] = jnp.zeros_like(acc_ref)

    acc_ref[...] += jnp.dot(adj_ref[...], hs_src_ref[...],
                            preferred_element_type=jnp.float32)

    @pl.when(k == pl.num_programs(1) - 1)
    def _():
        drow = drow_ref[...]
        # self-loop (weight 1) + target-side deg^-1/2 + bias
        y = (acc_ref[...] + hs_tgt_ref[...].astype(jnp.float32)) * drow + b_ref[...]
        xact = jnp.maximum(y, 0.0)                 # ReLU; dropout = identity (inference)
        # LayerNorm over the TRUE hidden dim; padded lanes are exactly 0, correct their
        # contribution to the two-pass variance analytically.
        hp = b_ref.shape[-1]
        inv_h = 1.0 / float(h_true)
        pad_cols = float(hp - h_true)
        mean = jnp.sum(xact, axis=-1, keepdims=True) * inv_h
        centered = xact - mean
        var = (jnp.sum(centered * centered, axis=-1, keepdims=True)
               - pad_cols * mean * mean) * inv_h
        xln = centered * jax.lax.rsqrt(var + LN_EPS) * g_ref[...] + beta_ref[...]
        # Fused next-layer source transform: Hs1 = (deg^-1/2 . xln) @ W1  (bf16)
        hs1_ref[...] = jnp.dot((xln * drow).astype(jnp.bfloat16), w1_ref[...],
                               preferred_element_type=jnp.float32).astype(hs1_ref.dtype)


def gcn_layer0(adj, hs0, dinv, b0, g0, be0, w1, *, h_true):
    np_, hp = hs0.shape
    tm = _pick_tile_m(np_)
    tk = _pick_tile_k(np_)
    kernel = functools.partial(layer0_kernel, h_true=h_true)
    return pl.pallas_call(
        kernel,
        out_shape=jax.ShapeDtypeStruct((np_, hp), jnp.bfloat16),
        grid_spec=pltpu.PrefetchScalarGridSpec(
            num_scalar_prefetch=0,
            grid=(np_ // tm, np_ // tk),
            in_specs=[
                pl.BlockSpec((tm, tk), lambda i, k: (i, k)),   # adj tile (bf16)
                pl.BlockSpec((tk, hp), lambda i, k: (k, 0)),   # Hs0 source tile (bf16)
                pl.BlockSpec((tm, hp), lambda i, k: (i, 0)),   # Hs0 target tile (self-loop)
                pl.BlockSpec((tm, 1),  lambda i, k: (i, 0)),   # deg^-1/2 target rows
                pl.BlockSpec((1, hp),  lambda i, k: (0, 0)),   # bias
                pl.BlockSpec((1, hp),  lambda i, k: (0, 0)),   # LN gamma
                pl.BlockSpec((1, hp),  lambda i, k: (0, 0)),   # LN beta
                pl.BlockSpec((hp, hp), lambda i, k: (0, 0)),   # W1 (next layer, bf16)
            ],
            out_specs=pl.BlockSpec((tm, hp), lambda i, k: (i, 0)),   # Hs1 (bf16)
            scratch_shapes=[pltpu.VMEM((tm, hp), jnp.float32)],
        ),
        compiler_params=pltpu.CompilerParams(
            dimension_semantics=("parallel", "arbitrary"),
            vmem_limit_bytes=VMEM_LIMIT_BYTES,
        ),
    )(adj, hs0, hs0, dinv, b0, g0, be0, w1)


# -------------------------------------------------- layer 1 (conv -> emb, ReLU) + fused post_mp
# Inner loop: acc += adj_tile @ Hs1_tile.
# Final-k epilogue: emb = conv output (pre-ReLU), then ReLU -> Linear -> [Dropout id] -> Linear
# -> sigmoid, all on the VMEM-resident tile.

def layer1_kernel(adj_ref, hs_src_ref, hs_tgt_ref, drow_ref, b_ref,
                  pw1_ref, pb1_ref, pw2_ref, pb2_ref,
                  emb_ref, out_ref, acc_ref):
    k = pl.program_id(1)

    @pl.when(k == 0)
    def _():
        acc_ref[...] = jnp.zeros_like(acc_ref)

    acc_ref[...] += jnp.dot(adj_ref[...], hs_src_ref[...],
                            preferred_element_type=jnp.float32)

    @pl.when(k == pl.num_programs(1) - 1)
    def _():
        y = (acc_ref[...] + hs_tgt_ref[...].astype(jnp.float32)) * drow_ref[...] + b_ref[...]
        emb_ref[...] = y                                        # raw conv output (emb)
        xact = jnp.maximum(y, 0.0)                              # ReLU; dropout = identity
        h = jnp.dot(xact.astype(jnp.bfloat16), pw1_ref[...],
                    preferred_element_type=jnp.float32) + pb1_ref[...]
        # post_mp dropout(0.25) is identity at inference
        z = jnp.dot(h.astype(jnp.bfloat16), pw2_ref[...],
                    preferred_element_type=jnp.float32) + pb2_ref[...]
        out_ref[...] = jax.nn.sigmoid(z)


def gcn_layer1(adj, hs1, dinv, b1, pw1, pb1, pw2, pb2):
    np_, hp = hs1.shape
    op = pw2.shape[1]
    tm = _pick_tile_m(np_)
    tk = _pick_tile_k(np_)
    return pl.pallas_call(
        layer1_kernel,
        out_shape=(jax.ShapeDtypeStruct((np_, hp), jnp.float32),
                   jax.ShapeDtypeStruct((np_, op), jnp.float32)),
        grid_spec=pltpu.PrefetchScalarGridSpec(
            num_scalar_prefetch=0,
            grid=(np_ // tm, np_ // tk),
            in_specs=[
                pl.BlockSpec((tm, tk), lambda i, k: (i, k)),   # adj tile (bf16)
                pl.BlockSpec((tk, hp), lambda i, k: (k, 0)),   # Hs1 source tile
                pl.BlockSpec((tm, hp), lambda i, k: (i, 0)),   # Hs1 target tile (self-loop)
                pl.BlockSpec((tm, 1),  lambda i, k: (i, 0)),   # deg^-1/2 target rows
                pl.BlockSpec((1, hp),  lambda i, k: (0, 0)),   # conv bias
                pl.BlockSpec((hp, hp), lambda i, k: (0, 0)),   # post_mp W1 (bf16)
                pl.BlockSpec((1, hp),  lambda i, k: (0, 0)),   # post_mp b1
                pl.BlockSpec((hp, op), lambda i, k: (0, 0)),   # post_mp W2 (bf16)
                pl.BlockSpec((1, op),  lambda i, k: (0, 0)),   # post_mp b2
            ],
            out_specs=[pl.BlockSpec((tm, hp), lambda i, k: (i, 0)),   # emb (f32)
                       pl.BlockSpec((tm, op), lambda i, k: (i, 0))],  # sigmoid(post_mp)
            scratch_shapes=[pltpu.VMEM((tm, hp), jnp.float32)],
        ),
        compiler_params=pltpu.CompilerParams(
            dimension_semantics=("parallel", "arbitrary"),
            vmem_limit_bytes=VMEM_LIMIT_BYTES,
        ),
    )(adj, hs1, hs1, dinv, b1, pw1, pb1, pw2, pb2)


# --------------------------------------------------------- graph / parameter constant prep
# Hoisted out of the per-forward jit: for a static graph this runs once.

def preprocess_graph(adj):
    n = adj.shape[0]
    np_ = _round_up(n, 128)
    adj = adj.astype(jnp.float32)
    adj_nd = adj * (1.0 - jnp.eye(n, dtype=jnp.float32))   # self-loops handled in-kernel
    deg = jnp.sum(adj_nd, axis=1) + 1.0                    # degree of (A + I)
    dinv = jax.lax.rsqrt(deg)
    adj_p = jnp.zeros((np_, np_), jnp.bfloat16).at[:n, :n].set(adj_nd.astype(jnp.bfloat16))
    dinv_p = jnp.ones((np_, 1), jnp.float32).at[:n, 0].set(dinv)   # padded nodes: deg=1
    return {"adj": adj_p, "dinv": dinv_p}


def prepare_params(params):
    cin, h = params["conv0_w"].shape
    o = params["post_w2"].shape[1]
    cin_p, hp, op = _round_up(cin, 128), _round_up(h, 128), _round_up(o, 128)

    def pad2(w, r, c, dtype):
        return jnp.zeros((r, c), dtype).at[:w.shape[0], :w.shape[1]].set(w.astype(dtype))

    def pad_row(v, c):
        return jnp.zeros((1, c), jnp.float32).at[0, :v.shape[0]].set(v)

    return {
        "w0": pad2(params["conv0_w"], cin_p, hp, jnp.bfloat16),
        "b0": pad_row(params["conv0_b"], hp),
        "w1": pad2(params["conv1_w"], hp, hp, jnp.bfloat16),
        "b1": pad_row(params["conv1_b"], hp),
        "g0": pad_row(params["ln0_g"], hp),
        "be0": pad_row(params["ln0_b"], hp),
        "pw1": pad2(params["post_w1"], hp, hp, jnp.bfloat16),
        "pb1": pad_row(params["post_b1"], hp),
        "pw2": pad2(params["post_w2"], hp, op, jnp.bfloat16),
        "pb2": pad_row(params["post_b2"], op),
    }


# -------------------------------------------------------------------------- full forward

def gnn_stack_forward(x, graph, pp, *, hidden_dim, output_dim):
    """Inference forward of GNNStack (task='node'): returns (emb, sigmoid(post_mp(x)))."""
    n, cin = x.shape
    np_ = graph["adj"].shape[0]
    cin_p = pp["w0"].shape[0]

    x_p = jnp.zeros((np_, cin_p), jnp.float32).at[:n, :cin].set(x)

    # layer 0 source transform: Hs0 = (deg^-1/2 . X) @ W0
    hs0 = gcn_transform(x_p, graph["dinv"], pp["w0"])
    # layer 0: aggregate + self-loop + bias + ReLU + LayerNorm; emits layer 1's Hs1 directly.
    hs1 = gcn_layer0(graph["adj"], hs0, graph["dinv"], pp["b0"], pp["g0"], pp["be0"],
                     pp["w1"], h_true=hidden_dim)
    # layer 1: aggregate + self-loop + bias (-> emb), ReLU, fused post_mp + sigmoid.
    emb_p, out_p = gcn_layer1(graph["adj"], hs1, graph["dinv"], pp["b1"],
                              pp["pw1"], pp["pb1"], pp["pw2"], pp["pb2"])

    # task == 'node': no global pooling.
    return emb_p[:n, :hidden_dim], out_p[:n, :output_dim]


# ------------------------------------------------------------------------- param init

def init_params(key, input_dim, hidden_dim, output_dim):
    def lin(k, fi, fo):
        kw, kb = jax.random.split(k)
        w = jax.random.normal(kw, (fi, fo), jnp.float32) / jnp.sqrt(float(fi))
        b = jax.random.normal(kb, (fo,), jnp.float32) * 0.01
        return w, b

    ks = jax.random.split(key, 4)
    c0w, c0b = lin(ks[0], input_dim, hidden_dim)
    c1w, c1b = lin(ks[1], hidden_dim, hidden_dim)
    pw1, pb1 = lin(ks[2], hidden_dim, hidden_dim)
    pw2, pb2 = lin(ks[3], hidden_dim, output_dim)
    return {
        "conv0_w": c0w, "conv0_b": c0b,
        "conv1_w": c1w, "conv1_b": c1b,
        "ln0_g": jnp.ones((hidden_dim,), jnp.float32),
        "ln0_b": jnp.zeros((hidden_dim,), jnp.float32),
        # lns[1] and convs[2] exist in the torch module but are unused (num_layers == 2).
        "post_w1": pw1, "post_b1": pb1,
        "post_w2": pw2, "post_b2": pb2,
    }


if __name__ == "__main__":
    key = jax.random.PRNGKey(0)
    k_x, k_a, k_p = jax.random.split(key, 3)

    N, IN_DIM, HIDDEN, OUT_DIM = 24, 16, 32, 8

    x = jax.random.normal(k_x, (N, IN_DIM), jnp.float32)
    rand = jax.random.uniform(k_a, (N, N))
    adj = (rand < 0.25).astype(jnp.float32)
    adj = jnp.maximum(adj, adj.T)                         # undirected
    adj = adj * (1.0 - jnp.eye(N, dtype=jnp.float32))     # kernels add self-loops themselves

    params = init_params(k_p, IN_DIM, HIDDEN, OUT_DIM)

    graph = preprocess_graph(adj)     # graph constants computed once, outside the jitted forward
    pp = prepare_params(params)       # padded / bf16 parameters computed once

    fwd = jax.jit(functools.partial(gnn_stack_forward,
                                    hidden_dim=HIDDEN, output_dim=OUT_DIM))
    emb, out = fwd(x, graph, pp)
    jax.block_until_ready((emb, out))

    assert emb.shape == (N, HIDDEN), emb.shape
    assert out.shape == (N, OUT_DIM), out.shape
    assert bool(jnp.all(jnp.isfinite(emb))) and bool(jnp.all(jnp.isfinite(out)))
    assert bool(jnp.all((out >= 0.0) & (out <= 1.0)))
    print("KERNEL_OK")
</pallas_src>

<mosaic_0001>
module attributes {stable_mosaic.version = 11 : i64} {
  func.func @transform_kernel(%arg0: i32, %arg1: memref<128x128xf32, #tpu.memory_space<vmem>>, %arg2: memref<128x1xf32, #tpu.memory_space<vmem>>, %arg3: memref<128x128xbf16, #tpu.memory_space<vmem>>, %arg4: memref<128x128xbf16, #tpu.memory_space<vmem>>) attributes {dimension_semantics = [#tpu.dimension_semantics<parallel>], iteration_bounds = array<i64: 1>, scalar_prefetch = 0 : i64, scratch_operands = 0 : i64, tpu.core_type = #tpu.core_type<tc>, window_params = [{transform_indices = @transform_0, window_bounds = array<i64: 128, 128>}, {transform_indices = @transform_1, window_bounds = array<i64: 128, 1>}, {pipeline_mode = #tpu.pipeline_mode<synchronous>, transform_indices = @transform_2, window_bounds = array<i64: 128, 128>}, {transform_indices = @transform_3, window_bounds = array<i64: 128, 128>}]} {
    %c0 = arith.constant 0 : index
    %c0_0 = arith.constant 0 : index
    %0 = vector.load %arg1[%c0, %c0_0] : memref<128x128xf32, #tpu.memory_space<vmem>>, vector<128x128xf32>
    %c0_1 = arith.constant 0 : index
    %c0_2 = arith.constant 0 : index
    %1 = vector.load %arg2[%c0_1, %c0_2] : memref<128x1xf32, #tpu.memory_space<vmem>>, vector<128x1xf32>
    %2 = vector.broadcast %1 : vector<128x1xf32> to vector<128x128xf32>
    %3 = arith.mulf %0, %2 : vector<128x128xf32>
    %4 = arith.truncf %3 : vector<128x128xf32> to vector<128x128xbf16>
    %c0_3 = arith.constant 0 : index
    %c0_4 = arith.constant 0 : index
    %5 = vector.load %arg3[%c0_3, %c0_4] : memref<128x128xbf16, #tpu.memory_space<vmem>>, vector<128x128xbf16>
    %cst = arith.constant dense<0.000000e+00> : vector<128x128xf32>
    %6 = tpu.matmul %4, %5, %cst {dimension_numbers = #tpu.dot_dimension_numbers<[1], [0], [0], [1], [0, 0, 1, 1], [], []>} : vector<128x128xbf16>, vector<128x128xbf16>, vector<128x128xf32> -> vector<128x128xf32>
    %7 = arith.truncf %6 : vector<128x128xf32> to vector<128x128xbf16>
    %c0_5 = arith.constant 0 : index
    %c0_6 = arith.constant 0 : index
    %8 = vector.load %arg4[%c0_5, %c0_6] : memref<128x128xbf16, #tpu.memory_space<vmem>>, vector<128x128xbf16>
    tpu.vector_store %arg4[%c0_5, %c0_6], %7 {strides = array<i32>} : memref<128x128xbf16, #tpu.memory_space<vmem>>, vector<128x128xbf16>,
    return
  }
  func.func @transform_0(%arg0: i32) -> (i32, i32) {
    %c0_i32 = arith.constant 0 : i32
    %c0_i32_0 = arith.constant 0 : i32
    return %arg0, %c0_i32 : i32, i32
  }
  func.func @transform_1(%arg0: i32) -> (i32, i32) {
    %c0_i32 = arith.constant 0 : i32
    %c0_i32_0 = arith.constant 0 : i32
    return %arg0, %c0_i32 : i32, i32
  }
  func.func @transform_2(%arg0: i32) -> (i32, i32) {
    %c0_i32 = arith.constant 0 : i32
    %c0_i32_0 = arith.constant 0 : i32
    %c0_i32_1 = arith.constant 0 : i32
    return %c0_i32, %c0_i32_0 : i32, i32
  }
  func.func @transform_3(%arg0: i32) -> (i32, i32) {
    %c0_i32 = arith.constant 0 : i32
    %c0_i32_0 = arith.constant 0 : i32
    return %arg0, %c0_i32 : i32, i32
  }
}

module attributes {stable_mosaic.version = 11 : i64} {
  func.func @layer0_kernel(%arg0: i32, %arg1: i32, %arg2: memref<128x128xbf16, #tpu.memory_space<vmem>>, %arg3: memref<128x128xbf16, #tpu.memory_space<vmem>>, %arg4: memref<128x128xbf16, #tpu.memory_space<vmem>>, %arg5: memref<128x1xf32, #tpu.memory_space<vmem>>, %arg6: memref<1x128xf32, #tpu.memory_space<vmem>>, %arg7: memref<1x128xf32, #tpu.memory_space<vmem>>, %arg8: memref<1x128xf32, #tpu.memory_space<vmem>>, %arg9: memref<128x128xbf16, #tpu.memory_space<vmem>>, %arg10: memref<128x128xbf16, #tpu.memory_space<vmem>>, %arg11: memref<128x128xf32, #tpu.memory_space<vmem>>) attributes {dimension_semantics = [#tpu.dimension_semantics<parallel>, #tpu.dimension_semantics<arbitrary>], iteration_bounds = array<i64: 1, 1>, scalar_prefetch = 0 : i64, scratch_operands = 1 : i64, tpu.core_type = #tpu.core_type<tc>, window_params = [{transform_indices = @transform_0, window_bounds = array<i64: 128, 128>}, {transform_indices = @transform_1, window_bounds = array<i64: 128, 128>}, {transform_indices = @transform_2, window_bounds = array<i64: 128, 128>}, {transform_indices = @transform_3, window_bounds = array<i64: 128, 1>}, {pipeline_mode = #tpu.pipeline_mode<synchronous>, transform_indices = @transform_4, window_bounds = array<i64: 1, 128>}, {pipeline_mode = #tpu.pipeline_mode<synchronous>, transform_indices = @transform_5, window_bounds = array<i64: 1, 128>}, {pipeline_mode = #tpu.pipeline_mode<synchronous>, transform_indices = @transform_6, window_bounds = array<i64: 1, 128>}, {pipeline_mode = #tpu.pipeline_mode<synchronous>, transform_indices = @transform_7, window_bounds = array<i64: 128, 128>}, {transform_indices = @transform_8, window_bounds = array<i64: 128, 128>}]} {
    %c0_i32 = arith.constant 0 : i32
    %0 = arith.cmpi eq, %arg1, %c0_i32 : i32
    %1 = arith.extui %0 : i1 to i32
    %c0_i32_0 = arith.constant 0 : i32
    %2 = arith.cmpi ne, %1, %c0_i32_0 : i32
    scf.if %2 {
      %cst_10 = arith.constant 0.000000e+00 : f32
      %12 = vector.broadcast %cst_10 : f32 to vector<128x128xf32>
      %c0_11 = arith.constant 0 : index
      %c0_12 = arith.constant 0 : index
      %13 = vector.load %arg11[%c0_11, %c0_12] : memref<128x128xf32, #tpu.memory_space<vmem>>, vector<128x128xf32>
      tpu.vector_store %arg11[%c0_11, %c0_12], %12 {strides = array<i32>} : memref<128x128xf32, #tpu.memory_space<vmem>>, vector<128x128xf32>,
    } else {
    }
    %c0 = arith.constant 0 : index
    %c0_1 = arith.constant 0 : index
    %3 = vector.load %arg11[%c0, %c0_1] : memref<128x128xf32, #tpu.memory_space<vmem>>, vector<128x128xf32>
    %c0_2 = arith.constant 0 : index
    %c0_3 = arith.constant 0 : index
    %4 = vector.load %arg2[%c0_2, %c0_3] : memref<128x128xbf16, #tpu.memory_space<vmem>>, vector<128x128xbf16>
    %c0_4 = arith.constant 0 : index
    %c0_5 = arith.constant 0 : index
    %5 = vector.load %arg3[%c0_4, %c0_5] : memref<128x128xbf16, #tpu.memory_space<vmem>>, vector<128x128xbf16>
    %cst = arith.constant dense<0.000000e+00> : vector<128x128xf32>
    %6 = tpu.matmul %4, %5, %cst {dimension_numbers = #tpu.dot_dimension_numbers<[1], [0], [0], [1], [0, 0, 1, 1], [], []>} : vector<128x128xbf16>, vector<128x128xbf16>, vector<128x128xf32> -> vector<128x128xf32>
    %7 = arith.addf %3, %6 : vector<128x128xf32>
    %c0_6 = arith.constant 0 : index
    %c0_7 = arith.constant 0 : index
    %8 = vector.load %arg11[%c0_6, %c0_7] : memref<128x128xf32, #tpu.memory_space<vmem>>, vector<128x128xf32>
    tpu.vector_store %arg11[%c0_6, %c0_7], %7 {strides = array<i32>} : memref<128x128xf32, #tpu.memory_space<vmem>>, vector<128x128xf32>,
    %c0_i32_8 = arith.constant 0 : i32
    %9 = arith.cmpi eq, %arg1, %c0_i32_8 : i32
    %10 = arith.extui %9 : i1 to i32
    %c0_i32_9 = arith.constant 0 : i32
    %11 = arith.cmpi ne, %10, %c0_i32_9 : i32
    scf.if %11 {
      %c0_10 = arith.constant 0 : index
      %c0_11 = arith.constant 0 : index
      %12 = vector.load %arg5[%c0_10, %c0_11] : memref<128x1xf32, #tpu.memory_space<vmem>>, vector<128x1xf32>
      %c0_12 = arith.constant 0 : index
      %c0_13 = arith.constant 0 : index
      %13 = vector.load %arg11[%c0_12, %c0_13] : memref<128x128xf32, #tpu.memory_space<vmem>>, vector<128x128xf32>
      %c0_14 = arith.constant 0 : index
      %c0_15 = arith.constant 0 : index
      %14 = vector.load %arg4[%c0_14, %c0_15] : memref<128x128xbf16, #tpu.memory_space<vmem>>, vector<128x128xbf16>
      %15 = arith.extf %14 : vector<128x128xbf16> to vector<128x128xf32>
      %16 = arith.addf %13, %15 : vector<128x128xf32>
      %17 = vector.broadcast %12 : vector<128x1xf32> to vector<128x128xf32>
      %18 = arith.mulf %16, %17 : vector<128x128xf32>
      %c0_16 = arith.constant 0 : index
      %c0_17 = arith.constant 0 : index
      %19 = vector.load %arg6[%c0_16, %c0_17] : memref<1x128xf32, #tpu.memory_space<vmem>>, vector<1x128xf32>
      %20 = vector.broadcast %19 : vector<1x128xf32> to vector<128x128xf32>
      %21 = arith.addf %18, %20 : vector<128x128xf32>
      %cst_18 = arith.constant 0.000000e+00 : f32
      %22 = vector.broadcast %cst_18 : f32 to vector<128x128xf32>
      %23 = arith.maximumf %21, %22 : vector<128x128xf32>
      %cst_19 = arith.constant dense<0.000000e+00> : vector<128xf32>
      %24 = vector.multi_reduction <add>, %23, %cst_19 [1] : vector<128x128xf32> to vector<128xf32>
      %25 = vector.shape_cast %24 : vector<128xf32> to vector<128x1xf32>
      %cst_20 = arith.constant 3.125000e-02 : f32
      %26 = vector.broadcast %cst_20 : f32 to vector<128x1xf32>
      %27 = arith.mulf %25, %26 : vector<128x1xf32>
      %28 = vector.broadcast %27 : vector<128x1xf32> to vector<128x128xf32>
      %29 = arith.subf %23, %28 : vector<128x128xf32>
      %30 = arith.mulf %29, %29 : vector<128x128xf32>
      %cst_21 = arith.constant dense<0.000000e+00> : vector<128xf32>
      %31 = vector.multi_reduction <add>, %30, %cst_21 [1] : vector<128x128xf32> to vector<128xf32>
      %32 = vector.shape_cast %31 : vector<128xf32> to vector<128x1xf32>
      %cst_22 = arith.constant 9.600000e+01 : f32
      %33 = vector.broadcast %cst_22 : f32 to vector<128x1xf32>
      %34 = arith.mulf %33, %27 : vector<128x1xf32>
      %35 = arith.mulf %34, %27 : vector<128x1xf32>
      %36 = arith.subf %32, %35 : vector<128x1xf32>
      %cst_23 = arith.constant 3.125000e-02 : f32
      %37 = vector.broadcast %cst_23 : f32 to vector<128x1xf32>
      %38 = arith.mulf %36, %37 : vector<128x1xf32>
      %cst_24 = arith.constant 9.99999974E-6 : f32
      %39 = vector.broadcast %cst_24 : f32 to vector<128x1xf32>
      %40 = arith.addf %38, %39 : vector<128x1xf32>
      %41 = math.rsqrt %40 : vector<128x1xf32>
      %42 = vector.broadcast %41 : vector<128x1xf32> to vector<128x128xf32>
      %43 = arith.mulf %29, %42 : vector<128x128xf32>
      %c0_25 = arith.constant 0 : index
      %c0_26 = arith.constant 0 : index
      %44 = vector.load %arg7[%c0_25, %c0_26] : memref<1x128xf32, #tpu.memory_space<vmem>>, vector<1x128xf32>
      %45 = vector.broadcast %44 : vector<1x128xf32> to vector<128x128xf32>
      %46 = arith.mulf %43, %45 : vector<128x128xf32>
      %c0_27 = arith.constant 0 : index
      %c0_28 = arith.constant 0 : index
      %47 = vector.load %arg8[%c0_27, %c0_28] : memref<1x128xf32, #tpu.memory_space<vmem>>, vector<1x128xf32>
      %48 = vector.broadcast %47 : vector<1x128xf32> to vector<128x128xf32>
      %49 = arith.addf %46, %48 : vector<128x128xf32>
      %50 = vector.broadcast %12 : vector<128x1xf32> to vector<128x128xf32>
      %51 = arith.mulf %49, %50 : vector<128x128xf32>
      %52 = arith.truncf %51 : vector<128x128xf32> to vector<128x128xbf16>
      %c0_29 = arith.constant 0 : index
      %c0_30 = arith.constant 0 : index
      %53 = vector.load %arg9[%c0_29, %c0_30] : memref<128x128xbf16, #tpu.memory_space<vmem>>, vector<128x128xbf16>
      %cst_31 = arith.constant dense<0.000000e+00> : vector<128x128xf32>
      %54 = tpu.matmul %52, %53, %cst_31 {dimension_numbers = #tpu.dot_dimension_numbers<[1], [0], [0], [1], [0, 0, 1, 1], [], []>} : vector<128x128xbf16>, vector<128x128xbf16>, vector<128x128xf32> -> vector<128x128xf32>
      %55 = arith.truncf %54 : vector<128x128xf32> to vector<128x128xbf16>
      %c0_32 = arith.constant 0 : index
      %c0_33 = arith.constant 0 : index
      %56 = vector.load %arg10[%c0_32, %c0_33] : memref<128x128xbf16, #tpu.memory_space<vmem>>, vector<128x128xbf16>
      tpu.vector_store %arg10[%c0_32, %c0_33], %55 {strides = array<i32>} : memref<128x128xbf16, #tpu.memory_space<vmem>>, vector<128x128xbf16>,
    } else {
    }
    return
  }
  func.func @transform_0(%arg0: i32, %arg1: i32) -> (i32, i32) {
    %c0_i32 = arith.constant 0 : i32
    return %arg0, %arg1 : i32, i32
  }
  func.func @transform_1(%arg0: i32, %arg1: i32) -> (i32, i32) {
    %c0_i32 = arith.constant 0 : i32
    %c0_i32_0 = arith.constant 0 : i32
    return %arg1, %c0_i32 : i32, i32
  }
  func.func @transform_2(%arg0: i32, %arg1: i32) -> (i32, i32) {
    %c0_i32 = arith.constant 0 : i32
    %c0_i32_0 = arith.constant 0 : i32
    return %arg0, %c0_i32 : i32, i32
  }
  func.func @transform_3(%arg0: i32, %arg1: i32) -> (i32, i32) {
    %c0_i32 = arith.constant 0 : i32
    %c0_i32_0 = arith.constant 0 : i32
    return %arg0, %c0_i32 : i32, i32
  }
  func.func @transform_4(%arg0: i32, %arg1: i32) -> (i32, i32) {
    %c0_i32 = arith.constant 0 : i32
    %c0_i32_0 = arith.constant 0 : i32
    %c0_i32_1 = arith.constant 0 : i32
    return %c0_i32, %c0_i32_0 : i32, i32
  }
  func.func @transform_5(%arg0: i32, %arg1: i32) -> (i32, i32) {
    %c0_i32 = arith.constant 0 : i32
    %c0_i32_0 = arith.constant 0 : i32
    %c0_i32_1 = arith.constant 0 : i32
    return %c0_i32, %c0_i32_0 : i32, i32
  }
  func.func @transform_6(%arg0: i32, %arg1: i32) -> (i32, i32) {
    %c0_i32 = arith.constant 0 : i32
    %c0_i32_0 = arith.constant 0 : i32
    %c0_i32_1 = arith.constant 0 : i32
    return %c0_i32, %c0_i32_0 : i32, i32
  }
  func.func @transform_7(%arg0: i32, %arg1: i32) -> (i32, i32) {
    %c0_i32 = arith.constant 0 : i32
    %c0_i32_0 = arith.constant 0 : i32
    %c0_i32_1 = arith.constant 0 : i32
    return %c0_i32, %c0_i32_0 : i32, i32
  }
  func.func @transform_8(%arg0: i32, %arg1: i32) -> (i32, i32) {
    %c0_i32 = arith.constant 0 : i32
    %c0_i32_0 = arith.constant 0 : i32
    return %arg0, %c0_i32 : i32, i32
  }
}

module attributes {stable_mosaic.version = 11 : i64} {
  func.func @layer1_kernel(%arg0: i32, %arg1: i32, %arg2: memref<128x128xbf16, #tpu.memory_space<vmem>>, %arg3: memref<128x128xbf16, #tpu.memory_space<vmem>>, %arg4: memref<128x128xbf16, #tpu.memory_space<vmem>>, %arg5: memref<128x1xf32, #tpu.memory_space<vmem>>, %arg6: memref<1x128xf32, #tpu.memory_space<vmem>>, %arg7: memref<128x128xbf16, #tpu.memory_space<vmem>>, %arg8: memref<1x128xf32, #tpu.memory_space<vmem>>, %arg9: memref<128x128xbf16, #tpu.memory_space<vmem>>, %arg10: memref<1x128xf32, #tpu.memory_space<vmem>>, %arg11: memref<128x128xf32, #tpu.memory_space<vmem>>, %arg12: memref<128x128xf32, #tpu.memory_space<vmem>>, %arg13: memref<128x128xf32, #tpu.memory_space<vmem>>) attributes {dimension_semantics = [#tpu.dimension_semantics<parallel>, #tpu.dimension_semantics<arbitrary>], iteration_bounds = array<i64: 1, 1>, scalar_prefetch = 0 : i64, scratch_operands = 1 : i64, tpu.core_type = #tpu.core_type<tc>, window_params = [{transform_indices = @transform_0, window_bounds = array<i64: 128, 128>}, {transform_indices = @transform_1, window_bounds = array<i64: 128, 128>}, {transform_indices = @transform_2, window_bounds = array<i64: 128, 128>}, {transform_indices = @transform_3, window_bounds = array<i64: 128, 1>}, {pipeline_mode = #tpu.pipeline_mode<synchronous>, transform_indices = @transform_4, window_bounds = array<i64: 1, 128>}, {pipeline_mode = #tpu.pipeline_mode<synchronous>, transform_indices = @transform_5, window_bounds = array<i64: 128, 128>}, {pipeline_mode = #tpu.pipeline_mode<synchronous>, transform_indices = @transform_6, window_bounds = array<i64: 1, 128>}, {pipeline_mode = #tpu.pipeline_mode<synchronous>, transform_indices = @transform_7, window_bounds = array<i64: 128, 128>}, {pipeline_mode = #tpu.pipeline_mode<synchronous>, transform_indices = @transform_8, window_bounds = array<i64: 1, 128>}, {transform_indices = @transform_9, window_bounds = array<i64: 128, 128>}, {transform_indices = @transform_10, window_bounds = array<i64: 128, 128>}]} {
    %c0_i32 = arith.constant 0 : i32
    %0 = arith.cmpi eq, %arg1, %c0_i32 : i32
    %1 = arith.extui %0 : i1 to i32
    %c0_i32_0 = arith.constant 0 : i32
    %2 = arith.cmpi ne, %1, %c0_i32_0 : i32
    scf.if %2 {
      %cst_10 = arith.constant 0.000000e+00 : f32
      %12 = vector.broadcast %cst_10 : f32 to vector<128x128xf32>
      %c0_11 = arith.constant 0 : index
      %c0_12 = arith.constant 0 : index
      %13 = vector.load %arg13[%c0_11, %c0_12] : memref<128x128xf32, #tpu.memory_space<vmem>>, vector<128x128xf32>
      tpu.vector_store %arg13[%c0_11, %c0_12], %12 {strides = array<i32>} : memref<128x128xf32, #tpu.memory_space<vmem>>, vector<128x128xf32>,
    } else {
    }
    %c0 = arith.constant 0 : index
    %c0_1 = arith.constant 0 : index
    %3 = vector.load %arg13[%c0, %c0_1] : memref<128x128xf32, #tpu.memory_space<vmem>>, vector<128x128xf32>
    %c0_2 = arith.constant 0 : index
    %c0_3 = arith.constant 0 : index
    %4 = vector.load %arg2[%c0_2, %c0_3] : memref<128x128xbf16, #tpu.memory_space<vmem>>, vector<128x128xbf16>
    %c0_4 = arith.constant 0 : index
    %c0_5 = arith.constant 0 : index
    %5 = vector.load %arg3[%c0_4, %c0_5] : memref<128x128xbf16, #tpu.memory_space<vmem>>, vector<128x128xbf16>
    %cst = arith.constant dense<0.000000e+00> : vector<128x128xf32>
    %6 = tpu.matmul %4, %5, %cst {dimension_numbers = #tpu.dot_dimension_numbers<[1], [0], [0], [1], [0, 0, 1, 1], [], []>} : vector<128x128xbf16>, vector<128x128xbf16>, vector<128x128xf32> -> vector<128x128xf32>
    %7 = arith.addf %3, %6 : vector<128x128xf32>
    %c0_6 = arith.constant 0 : index
    %c0_7 = arith.constant 0 : index
    %8 = vector.load %arg13[%c0_6, %c0_7] : memref<128x128xf32, #tpu.memory_space<vmem>>, vector<128x128xf32>
    tpu.vector_store %arg13[%c0_6, %c0_7], %7 {strides = array<i32>} : memref<128x128xf32, #tpu.memory_space<vmem>>, vector<128x128xf32>,
    %c0_i32_8 = arith.constant 0 : i32
    %9 = arith.cmpi eq, %arg1, %c0_i32_8 : i32
    %10 = arith.extui %9 : i1 to i32
    %c0_i32_9 = arith.constant 0 : i32
    %11 = arith.cmpi ne, %10, %c0_i32_9 : i32
    scf.if %11 {
      %c0_10 = arith.constant 0 : index
      %c0_11 = arith.constant 0 : index
      %12 = vector.load %arg13[%c0_10, %c0_11] : memref<128x128xf32, #tpu.memory_space<vmem>>, vector<128x128xf32>
      %c0_12 = arith.constant 0 : index
      %c0_13 = arith.constant 0 : index
      %13 = vector.load %arg4[%c0_12, %c0_13] : memref<128x128xbf16, #tpu.memory_space<vmem>>, vector<128x128xbf16>
      %14 = arith.extf %13 : vector<128x128xbf16> to vector<128x128xf32>
      %15 = arith.addf %12, %14 : vector<128x128xf32>
      %c0_14 = arith.constant 0 : index
      %c0_15 = arith.constant 0 : index
      %16 = vector.load %arg5[%c0_14, %c0_15] : memref<128x1xf32, #tpu.memory_space<vmem>>, vector<128x1xf32>
      %17 = vector.broadcast %16 : vector<128x1xf32> to vector<128x128xf32>
      %18 = arith.mulf %15, %17 : vector<128x128xf32>
      %c0_16 = arith.constant 0 : index
      %c0_17 = arith.constant 0 : index
      %19 = vector.load %arg6[%c0_16, %c0_17] : memref<1x128xf32, #tpu.memory_space<vmem>>, vector<1x128xf32>
      %20 = vector.broadcast %19 : vector<1x128xf32> to vector<128x128xf32>
      %21 = arith.addf %18, %20 : vector<128x128xf32>
      %c0_18 = arith.constant 0 : index
      %c0_19 = arith.constant 0 : index
      %22 = vector.load %arg11[%c0_18, %c0_19] : memref<128x128xf32, #tpu.memory_space<vmem>>, vector<128x128xf32>
      tpu.vector_store %arg11[%c0_18, %c0_19], %21 {strides = array<i32>} : memref<128x128xf32, #tpu.memory_space<vmem>>, vector<128x128xf32>,
      %cst_20 = arith.constant 0.000000e+00 : f32
      %23 = vector.broadcast %cst_20 : f32 to vector<128x128xf32>
      %24 = arith.maximumf %21, %23 : vector<128x128xf32>
      %25 = arith.truncf %24 : vector<128x128xf32> to vector<128x128xbf16>
      %c0_21 = arith.constant 0 : index
      %c0_22 = arith.constant 0 : index
      %26 = vector.load %arg7[%c0_21, %c0_22] : memref<128x128xbf16, #tpu.memory_space<vmem>>, vector<128x128xbf16>
      %cst_23 = arith.constant dense<0.000000e+00> : vector<128x128xf32>
      %27 = tpu.matmul %25, %26, %cst_23 {dimension_numbers = #tpu.dot_dimension_numbers<[1], [0], [0], [1], [0, 0, 1, 1], [], []>} : vector<128x128xbf16>, vector<128x128xbf16>, vector<128x128xf32> -> vector<128x128xf32>
      %c0_24 = arith.constant 0 : index
      %c0_25 = arith.constant 0 : index
      %28 = vector.load %arg8[%c0_24, %c0_25] : memref<1x128xf32, #tpu.memory_space<vmem>>, vector<1x128xf32>
      %29 = vector.broadcast %28 : vector<1x128xf32> to vector<128x128xf32>
      %30 = arith.addf %27, %29 : vector<128x128xf32>
      %31 = arith.truncf %30 : vector<128x128xf32> to vector<128x128xbf16>
      %c0_26 = arith.constant 0 : index
      %c0_27 = arith.constant 0 : index
      %32 = vector.load %arg9[%c0_26, %c0_27] : memref<128x128xbf16, #tpu.memory_space<vmem>>, vector<128x128xbf16>
      %cst_28 = arith.constant dense<0.000000e+00> : vector<128x128xf32>
      %33 = tpu.matmul %31, %32, %cst_28 {dimension_numbers = #tpu.dot_dimension_numbers<[1], [0], [0], [1], [0, 0, 1, 1], [], []>} : vector<128x128xbf16>, vector<128x128xbf16>, vector<128x128xf32> -> vector<128x128xf32>
      %c0_29 = arith.constant 0 : index
      %c0_30 = arith.constant 0 : index
      %34 = vector.load %arg10[%c0_29, %c0_30] : memref<1x128xf32, #tpu.memory_space<vmem>>, vector<1x128xf32>
      %35 = vector.broadcast %34 : vector<1x128xf32> to vector<128x128xf32>
      %36 = arith.addf %33, %35 : vector<128x128xf32>
      %37 = arith.negf %36 : vector<128x128xf32>
      %38 = math.exp %37 : vector<128x128xf32>
      %cst_31 = arith.constant 1.000000e+00 : f32
      %39 = vector.broadcast %cst_31 : f32 to vector<128x128xf32>
      %40 = arith.addf %39, %38 : vector<128x128xf32>
      %41 = arith.divf %39, %40 : vector<128x128xf32>
      %c0_32 = arith.constant 0 : index
      %c0_33 = arith.constant 0 : index
      %42 = vector.load %arg12[%c0_32, %c0_33] : memref<128x128xf32, #tpu.memory_space<vmem>>, vector<128x128xf32>
      tpu.vector_store %arg12[%c0_32, %c0_33], %41 {strides = array<i32>} : memref<128x128xf32, #tpu.memory_space<vmem>>, vector<128x128xf32>,
    } else {
    }
    return
  }
  func.func @transform_0(%arg0: i32, %arg1: i32) -> (i32, i32) {
    %c0_i32 = arith.constant 0 : i32
    return %arg0, %arg1 : i32, i32
  }
  func.func @transform_1(%arg0: i32, %arg1: i32) -> (i32, i32) {
    %c0_i32 = arith.constant 0 : i32
    %c0_i32_0 = arith.constant 0 : i32
    return %arg1, %c0_i32 : i32, i32
  }
  func.func @transform_2(%arg0: i32, %arg1: i32) -> (i32, i32) {
    %c0_i32 = arith.constant 0 : i32
    %c0_i32_0 = arith.constant 0 : i32
    return %arg0, %c0_i32 : i32, i32
  }
  func.func @transform_3(%arg0: i32, %arg1: i32) -> (i32, i32) {
    %c0_i32 = arith.constant 0 : i32
    %c0_i32_0 = arith.constant 0 : i32
    return %arg0, %c0_i32 : i32, i32
  }
  func.func @transform_4(%arg0: i32, %arg1: i32) -> (i32, i32) {
    %c0_i32 = arith.constant 0 : i32
    %c0_i32_0 = arith.constant 0 : i32
    %c0_i32_1 = arith.constant 0 : i32
    return %c0_i32, %c0_i32_0 : i32, i32
  }
  func.func @transform_5(%arg0: i32, %arg1: i32) -> (i32, i32) {
    %c0_i32 = arith.constant 0 : i32
    %c0_i32_0 = arith.constant 0 : i32
    %c0_i32_1 = arith.constant 0 : i32
    return %c0_i32, %c0_i32_0 : i32, i32
  }
  func.func @transform_6(%arg0: i32, %arg1: i32) -> (i32, i32) {
    %c0_i32 = arith.constant 0 : i32
    %c0_i32_0 = arith.constant 0 : i32
    %c0_i32_1 = arith.constant 0 : i32
    return %c0_i32, %c0_i32_0 : i32, i32
  }
  func.func @transform_7(%arg0: i32, %arg1: i32) -> (i32, i32) {
    %c0_i32 = arith.constant 0 : i32
    %c0_i32_0 = arith.constant 0 : i32
    %c0_i32_1 = arith.constant 0 : i32
    return %c0_i32, %c0_i32_0 : i32, i32
  }
  func.func @transform_8(%arg0: i32, %arg1: i32) -> (i32, i32) {
    %c0_i32 = arith.constant 0 : i32
    %c0_i32_0 = arith.constant 0 : i32
    %c0_i32_1 = arith.constant 0 : i32
    return %c0_i32, %c0_i32_0 : i32, i32
  }
  func.func @transform_9(%arg0: i32, %arg1: i32) -> (i32, i32) {
    %c0_i32 = arith.constant 0 : i32
    %c0_i32_0 = arith.constant 0 : i32
    return %arg0, %c0_i32 : i32, i32
  }
  func.func @transform_10(%arg0: i32, %arg1: i32) -> (i32, i32) {
    %c0_i32 = arith.constant 0 : i32
    %c0_i32_0 = arith.constant 0 : i32
    return %arg0, %c0_i32 : i32, i32
  }
}

</mosaic_0001>

<llo_original>
// kernel: gnn_stack_forward.3
$region0: #{gnn_stack_forward.3}
  #allocation0 [shape = 'u32[]', space=smem, size = 0x4, offset = 0x4, fixed_abs, tag = 'smem constant byte address 0x4 - core index']
  #allocation1 [shape = 'u32[144,128]{1,0:T(1,128)}', space=vmem, size = 0x12000, scoped, tag = 'internal scratch']
  %s0 = inlined_call_operand.vmem [shape: f32[128,128], index: 0, kind: input, shape index: {}]
  %s1 = inlined_call_operand.vmem [shape: f32[128,1], index: 1, kind: input, shape index: {}]
  %s2 = inlined_call_operand.vmem [shape: bf16[128,128], index: 2, kind: input, shape index: {}]
  %s3 = inlined_call_operand.vmem [shape: bf16[128,128], index: 3, kind: output, shape index: {}]
  %s4 = sld [smem:[#allocation0]]
  $region22: #{gnn_stack_forward.3} parent=0
    _
  %s6 = ssub.s32 1, %s4
  %s7 = scalar_select 0, %s6, %s4
  // Predicated region
  $region2: #{gnn_stack_forward.3} parent=0 // pred_check
    _
  $region3: #{gnn_stack_forward.3} parent=0 // pred_check_branch
    %9 = sbr.rel (0) target = $region5
  $region4: #{gnn_stack_forward.3} parent=0 // pred_region
    _
  $region5: #{gnn_stack_forward.3} parent=0 // pred_fallthru
    _
  // Predicated region
  $region6: #{gnn_stack_forward.3} parent=0 // pred_check
    _
  $region7: #{gnn_stack_forward.3} parent=0 // pred_check_branch
    %11 = sbr.rel (0) target = $region9
  $region8: #{gnn_stack_forward.3} parent=0 // pred_region
    _
  $region9: #{gnn_stack_forward.3} parent=0 // pred_fallthru
    _
  // Predicated region
  $region10: #{gnn_stack_forward.3} parent=0 // pred_check
    _
  $region11: #{gnn_stack_forward.3} parent=0 // pred_check_branch
    %13 = sbr.rel (0) target = $region13
  $region12: #{gnn_stack_forward.3} parent=0 // pred_region
    _
  $region13: #{gnn_stack_forward.3} parent=0 // pred_fallthru
    _
  %v15 = vld [vmem:[%s0] sm:$0xff]
  %v16 = vld [vmem:[%s0 + $0x8] sm:$0xff]
  %v17 = vld [vmem:[%s0 + $0x10] sm:$0xff]
  %v18 = vld [vmem:[%s0 + $0x18] sm:$0xff]
  %v19 = vld [vmem:[%s0 + $0x20] sm:$0xff]
  %v20 = vld [vmem:[%s0 + $0x28] sm:$0xff]
  %v21 = vld [vmem:[%s0 + $0x30] sm:$0xff]
  %v22 = vld [vmem:[%s0 + $0x38] sm:$0xff]
  %v23 = vld [vmem:[%s0 + $0x40] sm:$0xff]
  %v24 = vld [vmem:[%s0 + $0x48] sm:$0xff]
  %v25 = vld [vmem:[%s0 + $0x50] sm:$0xff]
  %v26 = vld [vmem:[%s0 + $0x58] sm:$0xff]
  %v27 = vld [vmem:[%s0 + $0x60] sm:$0xff]
  %v28 = vld [vmem:[%s0 + $0x68] sm:$0xff]
  %v29 = vld [vmem:[%s0 + $0x70] sm:$0xff]
  %v30 = vld [vmem:[%s0 + $0x78] sm:$0xff]
  %v31 = vld [vmem:[%s1] sm:$0xff]
  %v32 = vld [vmem:[%s1 + $0x8] sm:$0xff]
  %v33 = vld [vmem:[%s1 + $0x10] sm:$0xff]
  %v34 = vld [vmem:[%s1 + $0x18] sm:$0xff]
  %v35 = vld [vmem:[%s1 + $0x20] sm:$0xff]
  %v36 = vld [vmem:[%s1 + $0x28] sm:$0xff]
  %v37 = vld [vmem:[%s1 + $0x30] sm:$0xff]
  %v38 = vld [vmem:[%s1 + $0x38] sm:$0xff]
  %v39 = vld [vmem:[%s1 + $0x40] sm:$0xff]
  %v40 = vld [vmem:[%s1 + $0x48] sm:$0xff]
  %v41 = vld [vmem:[%s1 + $0x50] sm:$0xff]
  %v42 = vld [vmem:[%s1 + $0x58] sm:$0xff]
  %v43 = vld [vmem:[%s1 + $0x60] sm:$0xff]
  %v44 = vld [vmem:[%s1 + $0x68] sm:$0xff]
  %v45 = vld [vmem:[%s1 + $0x70] sm:$0xff]
  %v46 = vld [vmem:[%s1 + $0x78] sm:$0xff]
  %48 = vset.pattern.permute.xlu0 0
  %49 = vperm.xlu0 %48, %v31
  %v50 = vpop.permute.xlu0 %49
  %53 = vset.pattern.permute.xlu0 0
  %54 = vperm.xlu0 %53, %v32
  %v55 = vpop.permute.xlu0 %54
  %58 = vset.pattern.permute.xlu0 0
  %59 = vperm.xlu0 %58, %v33
  %v60 = vpop.permute.xlu0 %59
  %63 = vset.pattern.permute.xlu0 0
  %64 = vperm.xlu0 %63, %v34
  %v65 = vpop.permute.xlu0 %64
  %68 = vset.pattern.permute.xlu0 0
  %69 = vperm.xlu0 %68, %v35
  %v70 = vpop.permute.xlu0 %69
  %73 = vset.pattern.permute.xlu0 0
  %74 = vperm.xlu0 %73, %v36
  %v75 = vpop.permute.xlu0 %74
  %78 = vset.pattern.permute.xlu0 0
  %79 = vperm.xlu0 %78, %v37
  %v80 = vpop.permute.xlu0 %79
  %83 = vset.pattern.permute.xlu0 0
  %84 = vperm.xlu0 %83, %v38
  %v85 = vpop.permute.xlu0 %84
  %88 = vset.pattern.permute.xlu0 0
  %89 = vperm.xlu0 %88, %v39
  %v90 = vpop.permute.xlu0 %89
  %93 = vset.pattern.permute.xlu0 0
  %94 = vperm.xlu0 %93, %v40
  %v95 = vpop.permute.xlu0 %94
  %98 = vset.pattern.permute.xlu0 0
  %99 = vperm.xlu0 %98, %v41
  %v100 = vpop.permute.xlu0 %99
  %103 = vset.pattern.permute.xlu0 0
  %104 = vperm.xlu0 %103, %v42
  %v105 = vpop.permute.xlu0 %104
  %108 = vset.pattern.permute.xlu0 0
  %109 = vperm.xlu0 %108, %v43
  %v110 = vpop.permute.xlu0 %109
  %113 = vset.pattern.permute.xlu0 0
  %114 = vperm.xlu0 %113, %v44
  %v115 = vpop.permute.xlu0 %114
  %118 = vset.pattern.permute.xlu0 0
  %119 = vperm.xlu0 %118, %v45
  %v120 = vpop.permute.xlu0 %119
  %123 = vset.pattern.permute.xlu0 0
  %124 = vperm.xlu0 %123, %v46
  %v125 = vpop.permute.xlu0 %124
  %v127 = vmul.f32 %v15, %v50
  %v128 = vmul.f32 %v16, %v55
  %v129 = vmul.f32 %v17, %v60
  %v130 = vmul.f32 %v18, %v65
  %v131 = vmul.f32 %v19, %v70
  %v132 = vmul.f32 %v20, %v75
  %v133 = vmul.f32 %v21, %v80
  %v134 = vmul.f32 %v22, %v85
  %v135 = vmul.f32 %v23, %v90
  %v136 = vmul.f32 %v24, %v95
  %v137 = vmul.f32 %v25, %v100
  %v138 = vmul.f32 %v26, %v105
  %v139 = vmul.f32 %v27, %v110
  %v140 = vmul.f32 %v28, %v115
  %v141 = vmul.f32 %v29, %v120
  %v142 = vmul.f32 %v30, %v125
  %v143 = vpack.c.bf16 %v128, %v127
  %v144 = vpack.c.bf16 %v130, %v129
  %v145 = vpack.c.bf16 %v132, %v131
  %v146 = vpack.c.bf16 %v134, %v133
  %v147 = vpack.c.bf16 %v136, %v135
  %v148 = vpack.c.bf16 %v138, %v137
  %v149 = vpack.c.bf16 %v140, %v139
  %v150 = vpack.c.bf16 %v142, %v141
  %v151 = vld [vmem:[%s2] sm:$0xf]
  %v152 = vld [vmem:[%s2 + $0x4] sm:$0xf]
  %v153 = vld [vmem:[%s2 + $0x8] sm:$0xf]
  %v154 = vld [vmem:[%s2 + $0xc] sm:$0xf]
  %v155 = vld [vmem:[%s2 + $0x10] sm:$0xf]
  %v156 = vld [vmem:[%s2 + $0x14] sm:$0xf]
  %v157 = vld [vmem:[%s2 + $0x18] sm:$0xf]
  %v158 = vld [vmem:[%s2 + $0x1c] sm:$0xf]
  %v159 = vld [vmem:[%s2 + $0x20] sm:$0xf]
  %v160 = vld [vmem:[%s2 + $0x24] sm:$0xf]
  %v161 = vld [vmem:[%s2 + $0x28] sm:$0xf]
  %v162 = vld [vmem:[%s2 + $0x2c] sm:$0xf]
  %v163 = vld [vmem:[%s2 + $0x30] sm:$0xf]
  %v164 = vld [vmem:[%s2 + $0x34] sm:$0xf]
  %v165 = vld [vmem:[%s2 + $0x38] sm:$0xf]
  %v166 = vld [vmem:[%s2 + $0x3c] sm:$0xf]
  %v183 = vunpack.c.l.b16 %v151
  %v184 = vunpack.c.l.b16 %v152
  %v185 = vunpack.c.l.b16 %v153
  %v186 = vunpack.c.l.b16 %v154
  %v187 = vunpack.c.l.b16 %v155
  %v188 = vunpack.c.l.b16 %v156
  %v189 = vunpack.c.l.b16 %v157
  %v190 = vunpack.c.l.b16 %v158
  %v191 = vunpack.c.l.b16 %v159
  %v192 = vunpack.c.l.b16 %v160
  %v193 = vunpack.c.l.b16 %v161
  %v194 = vunpack.c.l.b16 %v162
  %v195 = vunpack.c.l.b16 %v163
  %v196 = vunpack.c.l.b16 %v164
  %v197 = vunpack.c.l.b16 %v165
  %v198 = vunpack.c.l.b16 %v166
  %v199 = vpack.c.b16 %v184, %v183
  %v200 = vpack.c.b16 %v186, %v185
  %v201 = vpack.c.b16 %v188, %v187
  %v202 = vpack.c.b16 %v190, %v189
  %v203 = vpack.c.b16 %v192, %v191
  %v204 = vpack.c.b16 %v194, %v193
  %v205 = vpack.c.b16 %v196, %v195
  %v206 = vpack.c.b16 %v198, %v197
  %215 = vmatprep.subr.bf16.mxu0 0
  %216 = vmatpush1.bf16.msra.mxu0 %v206
  %217 = vmatprep.subr.bf16.mxu0 0
  %218 = vmatpush1.bf16.msra.mxu0 %v205
  %219 = vmatprep.subr.bf16.mxu0 0
  %220 = vmatpush1.bf16.msra.mxu0 %v204
  %221 = vmatprep.subr.bf16.mxu0 0
  %222 = vmatpush1.bf16.msra.mxu0 %v203
  %223 = vmatprep.subr.bf16.mxu0 0
  %224 = vmatpush1.bf16.msra.mxu0 %v202
  %225 = vmatprep.subr.bf16.mxu0 0
  %226 = vmatpush1.bf16.msra.mxu0 %v201
  %227 = vmatprep.subr.bf16.mxu0 0
  %228 = vmatpush1.bf16.msra.mxu0 %v200
  %229 = vmatprep.subr.bf16.mxu0 0
  %230 = vmatpush1.bf16.msra.mxu0 %v199
  %231 = vmatprep.subr.bf16.mxu0 0
  %232 = vmatpush2.bf16.msra.mxu0 0
  %233 = vmatprep.subr.bf16.mxu0 0
  %234 = vmatpush2.bf16.msra.mxu0 0
  %235 = vmatprep.subr.bf16.mxu0 0
  %236 = vmatpush2.bf16.msra.mxu0 0
  %237 = vmatprep.subr.bf16.mxu0 0
  %238 = vmatpush2.bf16.msra.mxu0 0
  %239 = vmatprep.subr.bf16.mxu0 0
  %240 = vmatpush2.bf16.msra.mxu0 0
  %241 = vmatprep.subr.bf16.mxu0 0
  %242 = vmatpush2.bf16.msra.mxu0 0
  %243 = vmatprep.subr.bf16.mxu0 0
  %244 = vmatpush2.bf16.msra.mxu0 0
  %245 = vmatprep.subr.bf16.mxu0 0
  %246 = vmatpush2.bf16.msra.mxu0 0
  %247 = vmatprep.mubr.bf16.mxu0 0
  %248 = vmatmul.mubr.bf16.gmra.mxu0 %v143
  %v249 = vpop.f32.mrf.mxu0
  %v250 = vadd.f32 0.0, %v249
  %v251 = vpop.f32.mrf.mxu0
  %v252 = vpop.f32.mrf.mxu0
  %v253 = vadd.f32 0.0, %v252
  %v254 = vpop.f32.mrf.mxu0
  %255 = vmatprep.mubr.bf16.mxu0 0
  %256 = vmatmul.mubr.bf16.gmra.mxu0 %v144
  %v257 = vpop.f32.mrf.mxu0
  %v258 = vadd.f32 0.0, %v257
  %v259 = vpop.f32.mrf.mxu0
  %v260 = vpop.f32.mrf.mxu0
  %v261 = vadd.f32 0.0, %v260
  %v262 = vpop.f32.mrf.mxu0
  %263 = vmatprep.mubr.bf16.mxu0 0
  %264 = vmatmul.mubr.bf16.gmra.mxu0 %v145
  %v265 = vpop.f32.mrf.mxu0
  %v266 = vadd.f32 0.0, %v265
  %v267 = vpop.f32.mrf.mxu0
  %v268 = vpop.f32.mrf.mxu0
  %v269 = vadd.f32 0.0, %v268
  %v270 = vpop.f32.mrf.mxu0
  %271 = vmatprep.mubr.bf16.mxu0 0
  %272 = vmatmul.mubr.bf16.gmra.mxu0 %v146
  %v273 = vpop.f32.mrf.mxu0
  %v274 = vadd.f32 0.0, %v273
  %v275 = vpop.f32.mrf.mxu0
  %v276 = vpop.f32.mrf.mxu0
  %v277 = vadd.f32 0.0, %v276
  %v278 = vpop.f32.mrf.mxu0
  %279 = vmatprep.mubr.bf16.mxu0 0
  %280 = vmatmul.mubr.bf16.gmra.mxu0 %v147
  %v281 = vpop.f32.mrf.mxu0
  %v282 = vadd.f32 0.0, %v281
  %v283 = vpop.f32.mrf.mxu0
  %v284 = vpop.f32.mrf.mxu0
  %v285 = vadd.f32 0.0, %v284
  %v286 = vpop.f32.mrf.mxu0
  %287 = vmatprep.mubr.bf16.mxu0 0
  %288 = vmatmul.mubr.bf16.gmra.mxu0 %v148
  %v289 = vpop.f32.mrf.mxu0
  %v290 = vadd.f32 0.0, %v289
  %v291 = vpop.f32.mrf.mxu0
  %v292 = vpop.f32.mrf.mxu0
  %v293 = vadd.f32 0.0, %v292
  %v294 = vpop.f32.mrf.mxu0
  %295 = vmatprep.mubr.bf16.mxu0 0
  %296 = vmatmul.mubr.bf16.gmra.mxu0 %v149
  %v297 = vpop.f32.mrf.mxu0
  %v298 = vadd.f32 0.0, %v297
  %v299 = vpop.f32.mrf.mxu0
  %v300 = vpop.f32.mrf.mxu0
  %v301 = vadd.f32 0.0, %v300
  %v302 = vpop.f32.mrf.mxu0
  %303 = vmatprep.mubr.bf16.mxu0 0
  %304 = vmatmul.mubr.bf16.gmra.mxu0 %v150
  %v305 = vpop.f32.mrf.mxu0
  %v306 = vadd.f32 0.0, %v305
  %v307 = vpop.f32.mrf.mxu0
  %v308 = vpop.f32.mrf.mxu0
  %v309 = vadd.f32 0.0, %v308
  %v310 = vpop.f32.mrf.mxu0
  %311 = vdwg.mxu0
  %v312 = vpack.c.bf16 %v253, %v250
  %v313 = vpack.c.bf16 %v261, %v258
  %v314 = vpack.c.bf16 %v269, %v266
  %v315 = vpack.c.bf16 %v277, %v274
  %v316 = vpack.c.bf16 %v285, %v282
  %v317 = vpack.c.bf16 %v293, %v290
  %v318 = vpack.c.bf16 %v301, %v298
  %v319 = vpack.c.bf16 %v309, %v306
  %v328 = vunpack.c.l.b16 %v312
  %v329 = vunpack.c.h.b16 %v312
  %v330 = vunpack.c.l.b16 %v313
  %v331 = vunpack.c.h.b16 %v313
  %v332 = vunpack.c.l.b16 %v314
  %v333 = vunpack.c.h.b16 %v314
  %v334 = vunpack.c.l.b16 %v315
  %v335 = vunpack.c.h.b16 %v315
  %v336 = vunpack.c.l.b16 %v316
  %v337 = vunpack.c.h.b16 %v316
  %v338 = vunpack.c.l.b16 %v317
  %v339 = vunpack.c.h.b16 %v317
  %v340 = vunpack.c.l.b16 %v318
  %v341 = vunpack.c.h.b16 %v318
  %v342 = vunpack.c.l.b16 %v319
  %v343 = vunpack.c.h.b16 %v319
  %v344 = vpack.c.b16 %v328, %v328
  %v345 = vpack.c.b16 %v329, %v329
  %v346 = vpack.c.b16 %v330, %v330
  %v347 = vpack.c.b16 %v331, %v331
  %v348 = vpack.c.b16 %v332, %v332
  %v349 = vpack.c.b16 %v333, %v333
  %v350 = vpack.c.b16 %v334, %v334
  %v351 = vpack.c.b16 %v335, %v335
  %v352 = vpack.c.b16 %v336, %v336
  %v353 = vpack.c.b16 %v337, %v337
  %v354 = vpack.c.b16 %v338, %v338
  %v355 = vpack.c.b16 %v339, %v339
  %v356 = vpack.c.b16 %v340, %v340
  %v357 = vpack.c.b16 %v341, %v341
  %v358 = vpack.c.b16 %v342, %v342
  %v359 = vpack.c.b16 %v343, %v343
  %376 = vst [vmem:[%s3] sm:$0xf] %v344
  %377 = vst [vmem:[%s3 + $0x4] sm:$0xf] %v345
  %378 = vst [vmem:[%s3 + $0x8] sm:$0xf] %v346
  %379 = vst [vmem:[%s3 + $0xc] sm:$0xf] %v347
  %380 = vst [vmem:[%s3 + $0x10] sm:$0xf] %v348
  %381 = vst [vmem:[%s3 + $0x14] sm:$0xf] %v349
  %382 = vst [vmem:[%s3 + $0x18] sm:$0xf] %v350
  %383 = vst [vmem:[%s3 + $0x1c] sm:$0xf] %v351
  %384 = vst [vmem:[%s3 + $0x20] sm:$0xf] %v352
  %385 = vst [vmem:[%s3 + $0x24] sm:$0xf] %v353
  %386 = vst [vmem:[%s3 + $0x28] sm:$0xf] %v354
  %387 = vst [vmem:[%s3 + $0x2c] sm:$0xf] %v355
  %388 = vst [vmem:[%s3 + $0x30] sm:$0xf] %v356
  %389 = vst [vmem:[%s3 + $0x34] sm:$0xf] %v357
  %390 = vst [vmem:[%s3 + $0x38] sm:$0xf] %v358
  %391 = vst [vmem:[%s3 + $0x3c] sm:$0xf] %v359
  // Predicated region
  $region14: #{gnn_stack_forward.3} parent=0 // pred_check
    _
  $region15: #{gnn_stack_forward.3} parent=0 // pred_check_branch
    %393 = sbr.rel (0) target = $region17
  $region16: #{gnn_stack_forward.3} parent=0 // pred_region
    _
  $region17: #{gnn_stack_forward.3} parent=0 // pred_fallthru
    _
  // Predicated region
  $region18: #{gnn_stack_forward.3} parent=0 // pred_check
    _
  $region19: #{gnn_stack_forward.3} parent=0 // pred_check_branch
    %395 = sbr.rel (0) target = $region21
  $region20: #{gnn_stack_forward.3} parent=0 // pred_region
    _
  $region21: #{gnn_stack_forward.3} parent=0 // pred_fallthru
    _

// kernel: gnn_stack_forward.4
$region0: #{gnn_stack_forward.4}
  #allocation0 [shape = 'u32[]', space=smem, size = 0x4, offset = 0x4, fixed_abs, tag = 'smem constant byte address 0x4 - core index']
  #allocation1 [shape = 'u32[144,128]{1,0:T(1,128)}', space=vmem, size = 0x12000, scoped, tag = 'internal scratch']
  #allocation2 [shape = 'f32[128,128]{1,0:T(8,128)}', space=vmem, size = 0x10000, scoped, tag = 'scratch operand']
  %s0 = inlined_call_operand.vmem [shape: bf16[128,128], index: 0, kind: input, shape index: {}]
  %s1 = inlined_call_operand.vmem [shape: bf16[128,128], index: 1, kind: input, shape index: {}, may-alias: {1,2}]
  %s2 = inlined_call_operand.vmem [shape: bf16[128,128], index: 2, kind: input, shape index: {}, may-alias: {1,2}]
  %s3 = inlined_call_operand.vmem [shape: f32[128,1], index: 3, kind: input, shape index: {}]
  %s4 = inlined_call_operand.vmem [shape: f32[1,128], index: 4, kind: input, shape index: {}]
  %s5 = inlined_call_operand.vmem [shape: f32[1,128], index: 5, kind: input, shape index: {}]
  %s6 = inlined_call_operand.vmem [shape: f32[1,128], index: 6, kind: input, shape index: {}]
  %s7 = inlined_call_operand.vmem [shape: bf16[128,128], index: 7, kind: input, shape index: {}]
  %s8 = inlined_call_operand.vmem [shape: bf16[128,128], index: 8, kind: output, shape index: {}]
  %s9 = sld [smem:[#allocation0]]
  $region50: #{gnn_stack_forward.4} parent=0
    _
  %s11 = ssub.s32 1, %s9
  %s12 = scalar_select 0, %s11, %s9
  // Predicated region
  $region2: #{gnn_stack_forward.4} parent=0 // pred_check
    _
  $region3: #{gnn_stack_forward.4} parent=0 // pred_check_branch
    %14 = sbr.rel (0) target = $region5
  $region4: #{gnn_stack_forward.4} parent=0 // pred_region
    _
  $region5: #{gnn_stack_forward.4} parent=0 // pred_fallthru
    _
  // Predicated region
  $region6: #{gnn_stack_forward.4} parent=0 // pred_check
    _
  $region7: #{gnn_stack_forward.4} parent=0 // pred_check_branch
    %16 = sbr.rel (0) target = $region9
  $region8: #{gnn_stack_forward.4} parent=0 // pred_region
    _
  $region9: #{gnn_stack_forward.4} parent=0 // pred_fallthru
    _
  // Predicated region
  $region10: #{gnn_stack_forward.4} parent=0 // pred_check
    _
  $region11: #{gnn_stack_forward.4} parent=0 // pred_check_branch
    %18 = sbr.rel (0) target = $region13
  $region12: #{gnn_stack_forward.4} parent=0 // pred_region
    _
  $region13: #{gnn_stack_forward.4} parent=0 // pred_fallthru
    _
  // Predicated region
  $region14: #{gnn_stack_forward.4} parent=0 // pred_check
    _
  $region15: #{gnn_stack_forward.4} parent=0 // pred_check_branch
    %20 = sbr.rel (0) target = $region17
  $region16: #{gnn_stack_forward.4} parent=0 // pred_region
    _
  $region17: #{gnn_stack_forward.4} parent=0 // pred_fallthru
    _
  // Predicated region
  $region18: #{gnn_stack_forward.4} parent=0 // pred_check
    _
  $region19: #{gnn_stack_forward.4} parent=0 // pred_check_branch
    %22 = sbr.rel (0) target = $region21
  $region20: #{gnn_stack_forward.4} parent=0 // pred_region
    _
  $region21: #{gnn_stack_forward.4} parent=0 // pred_fallthru
    _
  // Predicated region
  $region22: #{gnn_stack_forward.4} parent=0 // pred_check
    _
  $region23: #{gnn_stack_forward.4} parent=0 // pred_check_branch
    %24 = sbr.rel (0) target = $region25
  $region24: #{gnn_stack_forward.4} parent=0 // pred_region
    _
  $region25: #{gnn_stack_forward.4} parent=0 // pred_fallthru
    _
  // Predicated region
  $region26: #{gnn_stack_forward.4} parent=0 // pred_check
    _
  $region27: #{gnn_stack_forward.4} parent=0 // pred_check_branch
    %26 = sbr.rel (0) target = $region29
  $region28: #{gnn_stack_forward.4} parent=0 // pred_region
    _
  $region29: #{gnn_stack_forward.4} parent=0 // pred_fallthru
    _
  // Predicated region
  $region30: #{gnn_stack_forward.4} parent=0 // pred_check
    _
  $region31: #{gnn_stack_forward.4} parent=0 // pred_check_branch
    %28 = sbr.rel (0) target = $region33
  $region32: #{gnn_stack_forward.4} parent=0 // pred_region
    _
  $region33: #{gnn_stack_forward.4} parent=0 // pred_fallthru
    _
  %p30 = scmp.eq.s32.totalorder 0, 0
  // Predicated region
  $region34: #{gnn_stack_forward.4} parent=0 // pred_check
    %p31 = pneg %p30
  $region35: #{gnn_stack_forward.4} parent=0 // pred_check_branch
    %33 = sbr.rel (%p31) target = $region37
  $region36: #{gnn_stack_forward.4} parent=0 // pred_region
    %34 = vst [vmem:[#allocation2] sm:$0xff] 0.0
    %35 = vst [vmem:[#allocation2 + $0x8] sm:$0xff] 0.0
    %36 = vst [vmem:[#allocation2 + $0x10] sm:$0xff] 0.0
    %37 = vst [vmem:[#allocation2 + $0x18] sm:$0xff] 0.0
    %38 = vst [vmem:[#allocation2 + $0x20] sm:$0xff] 0.0
    %39 = vst [vmem:[#allocation2 + $0x28] sm:$0xff] 0.0
    %40 = vst [vmem:[#allocation2 + $0x30] sm:$0xff] 0.0
    %41 = vst [vmem:[#allocation2 + $0x38] sm:$0xff] 0.0
    %42 = vst [vmem:[#allocation2 + $0x40] sm:$0xff] 0.0
    %43 = vst [vmem:[#allocation2 + $0x48] sm:$0xff] 0.0
    %44 = vst [vmem:[#allocation2 + $0x50] sm:$0xff] 0.0
    %45 = vst [vmem:[#allocation2 + $0x58] sm:$0xff] 0.0
    %46 = vst [vmem:[#allocation2 + $0x60] sm:$0xff] 0.0
    %47 = vst [vmem:[#allocation2 + $0x68] sm:$0xff] 0.0
    %48 = vst [vmem:[#allocation2 + $0x70] sm:$0xff] 0.0
    %49 = vst [vmem:[#allocation2 + $0x78] sm:$0xff] 0.0
  $region37: #{gnn_stack_forward.4} parent=0 // pred_fallthru
    _
  %v50 = vld [vmem:[#allocation2] sm:$0xff]
  %v51 = vld [vmem:[#allocation2 + $0x8] sm:$0xff]
  %v52 = vld [vmem:[#allocation2 + $0x10] sm:$0xff]
  %v53 = vld [vmem:[#allocation2 + $0x18] sm:$0xff]
  %v54 = vld [vmem:[#allocation2 + $0x20] sm:$0xff]
  %v55 = vld [vmem:[#allocation2 + $0x28] sm:$0xff]
  %v56 = vld [vmem:[#allocation2 + $0x30] sm:$0xff]
  %v57 = vld [vmem:[#allocation2 + $0x38] sm:$0xff]
  %v58 = vld [vmem:[#allocation2 + $0x40] sm:$0xff]
  %v59 = vld [vmem:[#allocation2 + $0x48] sm:$0xff]
  %v60 = vld [vmem:[#allocation2 + $0x50] sm:$0xff]
  %v61 = vld [vmem:[#allocation2 + $0x58] sm:$0xff]
  %v62 = vld [vmem:[#allocation2 + $0x60] sm:$0xff]
  %v63 = vld [vmem:[#allocation2 + $0x68] sm:$0xff]
  %v64 = vld [vmem:[#allocation2 + $0x70] sm:$0xff]
  %v65 = vld [vmem:[#allocation2 + $0x78] sm:$0xff]
  %v66 = vld [vmem:[%s0] sm:$0xf]
  %v67 = vld [vmem:[%s0 + $0x4] sm:$0xf]
  %v68 = vld [vmem:[%s0 + $0x8] sm:$0xf]
  %v69 = vld [vmem:[%s0 + $0xc] sm:$0xf]
  %v70 = vld [vmem:[%s0 + $0x10] sm:$0xf]
  %v71 = vld [vmem:[%s0 + $0x14] sm:$0xf]
  %v72 = vld [vmem:[%s0 + $0x18] sm:$0xf]
  %v73 = vld [vmem:[%s0 + $0x1c] sm:$0xf]
  %v74 = vld [vmem:[%s0 + $0x20] sm:$0xf]
  %v75 = vld [vmem:[%s0 + $0x24] sm:$0xf]
  %v76 = vld [vmem:[%s0 + $0x28] sm:$0xf]
  %v77 = vld [vmem:[%s0 + $0x2c] sm:$0xf]
  %v78 = vld [vmem:[%s0 + $0x30] sm:$0xf]
  %v79 = vld [vmem:[%s0 + $0x34] sm:$0xf]
  %v80 = vld [vmem:[%s0 + $0x38] sm:$0xf]
  %v81 = vld [vmem:[%s0 + $0x3c] sm:$0xf]
  %v82 = vld [vmem:[%s1] sm:$0xf]
  %v83 = vld [vmem:[%s1 + $0x4] sm:$0xf]
  %v84 = vld [vmem:[%s1 + $0x8] sm:$0xf]
  %v85 = vld [vmem:[%s1 + $0xc] sm:$0xf]
  %v86 = vld [vmem:[%s1 + $0x10] sm:$0xf]
  %v87 = vld [vmem:[%s1 + $0x14] sm:$0xf]
  %v88 = vld [vmem:[%s1 + $0x18] sm:$0xf]
  %v89 = vld [vmem:[%s1 + $0x1c] sm:$0xf]
  %v90 = vld [vmem:[%s1 + $0x20] sm:$0xf]
  %v91 = vld [vmem:[%s1 + $0x24] sm:$0xf]
  %v92 = vld [vmem:[%s1 + $0x28] sm:$0xf]
  %v93 = vld [vmem:[%s1 + $0x2c] sm:$0xf]
  %v94 = vld [vmem:[%s1 + $0x30] sm:$0xf]
  %v95 = vld [vmem:[%s1 + $0x34] sm:$0xf]
  %v96 = vld [vmem:[%s1 + $0x38] sm:$0xf]
  %v97 = vld [vmem:[%s1 + $0x3c] sm:$0xf]
  %v114 = vunpack.c.l.b16 %v66
  %v115 = vunpack.c.l.b16 %v67
  %v116 = vunpack.c.l.b16 %v68
  %v117 = vunpack.c.l.b16 %v69
  %v118 = vunpack.c.l.b16 %v70
  %v119 = vunpack.c.l.b16 %v71
  %v120 = vunpack.c.l.b16 %v72
  %v121 = vunpack.c.l.b16 %v73
  %v122 = vunpack.c.l.b16 %v74
  %v123 = vunpack.c.l.b16 %v75
  %v124 = vunpack.c.l.b16 %v76
  %v125 = vunpack.c.l.b16 %v77
  %v126 = vunpack.c.l.b16 %v78
  %v127 = vunpack.c.l.b16 %v79
  %v128 = vunpack.c.l.b16 %v80
  %v129 = vunpack.c.l.b16 %v81
  %v130 = vpack.c.b16 %v115, %v114
  %v131 = vpack.c.b16 %v117, %v116
  %v132 = vpack.c.b16 %v119, %v118
  %v133 = vpack.c.b16 %v121, %v120
  %v134 = vpack.c.b16 %v123, %v122
  %v135 = vpack.c.b16 %v125, %v124
  %v136 = vpack.c.b16 %v127, %v126
  %v137 = vpack.c.b16 %v129, %v128
  %v162 = vunpack.c.l.b16 %v82
  %v163 = vunpack.c.l.b16 %v83
  %v164 = vunpack.c.l.b16 %v84
  %v165 = vunpack.c.l.b16 %v85
  %v166 = vunpack.c.l.b16 %v86
  %v167 = vunpack.c.l.b16 %v87
  %v168 = vunpack.c.l.b16 %v88
  %v169 = vunpack.c.l.b16 %v89
  %v170 = vunpack.c.l.b16 %v90
  %v171 = vunpack.c.l.b16 %v91
  %v172 = vunpack.c.l.b16 %v92
  %v173 = vunpack.c.l.b16 %v93
  %v174 = vunpack.c.l.b16 %v94
  %v175 = vunpack.c.l.b16 %v95
  %v176 = vunpack.c.l.b16 %v96
  %v177 = vunpack.c.l.b16 %v97
  %v178 = vpack.c.b16 %v163, %v162
  %v179 = vpack.c.b16 %v165, %v164
  %v180 = vpack.c.b16 %v167, %v166
  %v181 = vpack.c.b16 %v169, %v168
  %v182 = vpack.c.b16 %v171, %v170
  %v183 = vpack.c.b16 %v173, %v172
  %v184 = vpack.c.b16 %v175, %v174
  %v185 = vpack.c.b16 %v177, %v176
  %194 = vmatprep.subr.bf16.mxu0 0
  %195 = vmatpush1.bf16.msra.mxu0 %v185
  %196 = vmatprep.subr.bf16.mxu0 0
  %197 = vmatpush1.bf16.msra.mxu0 %v184
  %198 = vmatprep.subr.bf16.mxu0 0
  %199 = vmatpush1.bf16.msra.mxu0 %v183
  %200 = vmatprep.subr.bf16.mxu0 0
  %201 = vmatpush1.bf16.msra.mxu0 %v182
  %202 = vmatprep.subr.bf16.mxu0 0
  %203 = vmatpush1.bf16.msra.mxu0 %v181
  %204 = vmatprep.subr.bf16.mxu0 0
  %205 = vmatpush1.bf16.msra.mxu0 %v180
  %206 = vmatprep.subr.bf16.mxu0 0
  %207 = vmatpush1.bf16.msra.mxu0 %v179
  %208 = vmatprep.subr.bf16.mxu0 0
  %209 = vmatpush1.bf16.msra.mxu0 %v178
  %210 = vmatprep.subr.bf16.mxu0 0
  %211 = vmatpush2.bf16.msra.mxu0 0
  %212 = vmatprep.subr.bf16.mxu0 0
  %213 = vmatpush2.bf16.msra.mxu0 0
  %214 = vmatprep.subr.bf16.mxu0 0
  %215 = vmatpush2.bf16.msra.mxu0 0
  %216 = vmatprep.subr.bf16.mxu0 0
  %217 = vmatpush2.bf16.msra.mxu0 0
  %218 = vmatprep.subr.bf16.mxu0 0
  %219 = vmatpush2.bf16.msra.mxu0 0
  %220 = vmatprep.subr.bf16.mxu0 0
  %221 = vmatpush2.bf16.msra.mxu0 0
  %222 = vmatprep.subr.bf16.mxu0 0
  %223 = vmatpush2.bf16.msra.mxu0 0
  %224 = vmatprep.subr.bf16.mxu0 0
  %225 = vmatpush2.bf16.msra.mxu0 0
  %226 = vmatprep.mubr.bf16.mxu0 0
  %227 = vmatmul.mubr.bf16.gmra.mxu0 %v130
  %v228 = vpop.f32.mrf.mxu0
  %v229 = vadd.f32 0.0, %v228
  %v230 = vpop.f32.mrf.mxu0
  %v231 = vpop.f32.mrf.mxu0
  %v232 = vadd.f32 0.0, %v231
  %v233 = vpop.f32.mrf.mxu0
  %234 = vmatprep.mubr.bf16.mxu0 0
  %235 = vmatmul.mubr.bf16.gmra.mxu0 %v131
  %v236 = vpop.f32.mrf.mxu0
  %v237 = vadd.f32 0.0, %v236
  %v238 = vpop.f32.mrf.mxu0
  %v239 = vpop.f32.mrf.mxu0
  %v240 = vadd.f32 0.0, %v239
  %v241 = vpop.f32.mrf.mxu0
  %242 = vmatprep.mubr.bf16.mxu0 0
  %243 = vmatmul.mubr.bf16.gmra.mxu0 %v132
  %v244 = vpop.f32.mrf.mxu0
  %v245 = vadd.f32 0.0, %v244
  %v246 = vpop.f32.mrf.mxu0
  %v247 = vpop.f32.mrf.mxu0
  %v248 = vadd.f32 0.0, %v247
  %v249 = vpop.f32.mrf.mxu0
  %250 = vmatprep.mubr.bf16.mxu0 0
  %251 = vmatmul.mubr.bf16.gmra.mxu0 %v133
  %v252 = vpop.f32.mrf.mxu0
  %v253 = vadd.f32 0.0, %v252
  %v254 = vpop.f32.mrf.mxu0
  %v255 = vpop.f32.mrf.mxu0
  %v256 = vadd.f32 0.0, %v255
  %v257 = vpop.f32.mrf.mxu0
  %258 = vmatprep.mubr.bf16.mxu0 0
  %259 = vmatmul.mubr.bf16.gmra.mxu0 %v134
  %v260 = vpop.f32.mrf.mxu0
  %v261 = vadd.f32 0.0, %v260
  %v262 = vpop.f32.mrf.mxu0
  %v263 = vpop.f32.mrf.mxu0
  %v264 = vadd.f32 0.0, %v263
  %v265 = vpop.f32.mrf.mxu0
  %266 = vmatprep.mubr.bf16.mxu0 0
  %267 = vmatmul.mubr.bf16.gmra.mxu0 %v135
  %v268 = vpop.f32.mrf.mxu0
  %v269 = vadd.f32 0.0, %v268
  %v270 = vpop.f32.mrf.mxu0
  %v271 = vpop.f32.mrf.mxu0
  %v272 = vadd.f32 0.0, %v271
  %v273 = vpop.f32.mrf.mxu0
  %274 = vmatprep.mubr.bf16.mxu0 0
  %275 = vmatmul.mubr.bf16.gmra.mxu0 %v136
  %v276 = vpop.f32.mrf.mxu0
  %v277 = vadd.f32 0.0, %v276
  %v278 = vpop.f32.mrf.mxu0
  %v279 = vpop.f32.mrf.mxu0
  %v280 = vadd.f32 0.0, %v279
  %v281 = vpop.f32.mrf.mxu0
  %282 = vmatprep.mubr.bf16.mxu0 0
  %283 = vmatmul.mubr.bf16.gmra.mxu0 %v137
  %v284 = vpop.f32.mrf.mxu0
  %v285 = vadd.f32 0.0, %v284
  %v286 = vpop.f32.mrf.mxu0
  %v287 = vpop.f32.mrf.mxu0
  %v288 = vadd.f32 0.0, %v287
  %v289 = vpop.f32.mrf.mxu0
  %290 = vdwg.mxu0
  %v291 = vadd.f32 %v50, %v229
  %v292 = vadd.f32 %v51, %v232
  %v293 = vadd.f32 %v52, %v237
  %v294 = vadd.f32 %v53, %v240
  %v295 = vadd.f32 %v54, %v245
  %v296 = vadd.f32 %v55, %v248
  %v297 = vadd.f32 %v56, %v253
  %v298 = vadd.f32 %v57, %v256
  %v299 = vadd.f32 %v58, %v261
  %v300 = vadd.f32 %v59, %v264
  %v301 = vadd.f32 %v60, %v269
  %v302 = vadd.f32 %v61, %v272
  %v303 = vadd.f32 %v62, %v277
  %v304 = vadd.f32 %v63, %v280
  %v305 = vadd.f32 %v64, %v285
  %v306 = vadd.f32 %v65, %v288
  %307 = vst [vmem:[#allocation2] sm:$0xff] %v291
  %308 = vst [vmem:[#allocation2 + $0x8] sm:$0xff] %v292
  %309 = vst [vmem:[#allocation2 + $0x10] sm:$0xff] %v293
  %310 = vst [vmem:[#allocation2 + $0x18] sm:$0xff] %v294
  %311 = vst [vmem:[#allocation2 + $0x20] sm:$0xff] %v295
  %312 = vst [vmem:[#allocation2 + $0x28] sm:$0xff] %v296
  %313 = vst [vmem:[#allocation2 + $0x30] sm:$0xff] %v297
  %314 = vst [vmem:[#allocation2 + $0x38] sm:$0xff] %v298
  %315 = vst [vmem:[#allocation2 + $0x40] sm:$0xff] %v299
  %316 = vst [vmem:[#allocation2 + $0x48] sm:$0xff] %v300
  %317 = vst [vmem:[#allocation2 + $0x50] sm:$0xff] %v301
  %318 = vst [vmem:[#allocation2 + $0x58] sm:$0xff] %v302
  %319 = vst [vmem:[#allocation2 + $0x60] sm:$0xff] %v303
  %320 = vst [vmem:[#allocation2 + $0x68] sm:$0xff] %v304
  %321 = vst [vmem:[#allocation2 + $0x70] sm:$0xff] %v305
  %322 = vst [vmem:[#allocation2 + $0x78] sm:$0xff] %v306
  // Predicated region
  $region38: #{gnn_stack_forward.4} parent=0 // pred_check
    %p323 = pneg %p30
  $region39: #{gnn_stack_forward.4} parent=0 // pred_check_branch
    %325 = sbr.rel (%p323) target = $region41
  $region40: #{gnn_stack_forward.4} parent=0 // pred_region
    %v326 = vld [vmem:[%s3] sm:$0xff]
    %v327 = vld [vmem:[%s3 + $0x8] sm:$0xff]
    %v328 = vld [vmem:[%s3 + $0x10] sm:$0xff]
    %v329 = vld [vmem:[%s3 + $0x18] sm:$0xff]
    %v330 = vld [vmem:[%s3 + $0x20] sm:$0xff]
    %v331 = vld [vmem:[%s3 + $0x28] sm:$0xff]
    %v332 = vld [vmem:[%s3 + $0x30] sm:$0xff]
    %v333 = vld [vmem:[%s3 + $0x38] sm:$0xff]
    %v334 = vld [vmem:[%s3 + $0x40] sm:$0xff]
    %v335 = vld [vmem:[%s3 + $0x48] sm:$0xff]
    %v336 = vld [vmem:[%s3 + $0x50] sm:$0xff]
    %v337 = vld [vmem:[%s3 + $0x58] sm:$0xff]
    %v338 = vld [vmem:[%s3 + $0x60] sm:$0xff]
    %v339 = vld [vmem:[%s3 + $0x68] sm:$0xff]
    %v340 = vld [vmem:[%s3 + $0x70] sm:$0xff]
    %v341 = vld [vmem:[%s3 + $0x78] sm:$0xff]
    %v342 = vld [vmem:[#allocation2] sm:$0xff]
    %v343 = vld [vmem:[#allocation2 + $0x8] sm:$0xff]
    %v344 = vld [vmem:[#allocation2 + $0x10] sm:$0xff]
    %v345 = vld [vmem:[#allocation2 + $0x18] sm:$0xff]
    %v346 = vld [vmem:[#allocation2 + $0x20] sm:$0xff]
    %v347 = vld [vmem:[#allocation2 + $0x28] sm:$0xff]
    %v348 = vld [vmem:[#allocation2 + $0x30] sm:$0xff]
    %v349 = vld [vmem:[#allocation2 + $0x38] sm:$0xff]
    %v350 = vld [vmem:[#allocation2 + $0x40] sm:$0xff]
    %v351 = vld [vmem:[#allocation2 + $0x48] sm:$0xff]
    %v352 = vld [vmem:[#allocation2 + $0x50] sm:$0xff]
    %v353 = vld [vmem:[#allocation2 + $0x58] sm:$0xff]
    %v354 = vld [vmem:[#allocation2 + $0x60] sm:$0xff]
    %v355 = vld [vmem:[#allocation2 + $0x68] sm:$0xff]
    %v356 = vld [vmem:[#allocation2 + $0x70] sm:$0xff]
    %v357 = vld [vmem:[#allocation2 + $0x78] sm:$0xff]
    %v358 = vld [vmem:[%s2] sm:$0xf]
    %v359 = vld [vmem:[%s2 + $0x4] sm:$0xf]
    %v360 = vld [vmem:[%s2 + $0x8] sm:$0xf]
    %v361 = vld [vmem:[%s2 + $0xc] sm:$0xf]
    %v362 = vld [vmem:[%s2 + $0x10] sm:$0xf]
    %v363 = vld [vmem:[%s2 + $0x14] sm:$0xf]
    %v364 = vld [vmem:[%s2 + $0x18] sm:$0xf]
    %v365 = vld [vmem:[%s2 + $0x1c] sm:$0xf]
    %v366 = vld [vmem:[%s2 + $0x20] sm:$0xf]
    %v367 = vld [vmem:[%s2 + $0x24] sm:$0xf]
    %v368 = vld [vmem:[%s2 + $0x28] sm:$0xf]
    %v369 = vld [vmem:[%s2 + $0x2c] sm:$0xf]
    %v370 = vld [vmem:[%s2 + $0x30] sm:$0xf]
    %v371 = vld [vmem:[%s2 + $0x34] sm:$0xf]
    %v372 = vld [vmem:[%s2 + $0x38] sm:$0xf]
    %v373 = vld [vmem:[%s2 + $0x3c] sm:$0xf]
    %v374 = vunpack.c.l.bf16 %v358
    %v375 = vunpack.c.l.bf16 %v359
    %v376 = vunpack.c.l.bf16 %v360
    %v377 = vunpack.c.l.bf16 %v361
    %v378 = vunpack.c.l.bf16 %v362
    %v379 = vunpack.c.l.bf16 %v363
    %v380 = vunpack.c.l.bf16 %v364
    %v381 = vunpack.c.l.bf16 %v365
    %v382 = vunpack.c.l.bf16 %v366
    %v383 = vunpack.c.l.bf16 %v367
    %v384 = vunpack.c.l.bf16 %v368
    %v385 = vunpack.c.l.bf16 %v369
    %v386 = vunpack.c.l.bf16 %v370
    %v387 = vunpack.c.l.bf16 %v371
    %v388 = vunpack.c.l.bf16 %v372
    %v389 = vunpack.c.l.bf16 %v373
    %v390 = vadd.f32 %v342, %v374
    %v391 = vadd.f32 %v343, %v375
    %v392 = vadd.f32 %v344, %v376
    %v393 = vadd.f32 %v345, %v377
    %v394 = vadd.f32 %v346, %v378
    %v395 = vadd.f32 %v347, %v379
    %v396 = vadd.f32 %v348, %v380
    %v397 = vadd.f32 %v349, %v381
    %v398 = vadd.f32 %v350, %v382
    %v399 = vadd.f32 %v351, %v383
    %v400 = vadd.f32 %v352, %v384
    %v401 = vadd.f32 %v353, %v385
    %v402 = vadd.f32 %v354, %v386
    %v403 = vadd.f32 %v355, %v387
    %v404 = vadd.f32 %v356, %v388
    %v405 = vadd.f32 %v357, %v389
    %407 = vset.pattern.permute.xlu0 0
    %408 = vperm.xlu0 %407, %v326
    %v409 = vpop.permute.xlu0 %408
    %412 = vset.pattern.permute.xlu0 0
    %413 = vperm.xlu0 %412, %v327
    %v414 = vpop.permute.xlu0 %413
    %417 = vset.pattern.permute.xlu0 0
    %418 = vperm.xlu0 %417, %v328
    %v419 = vpop.permute.xlu0 %418
    %422 = vset.pattern.permute.xlu0 0
    %423 = vperm.xlu0 %422, %v329
    %v424 = vpop.permute.xlu0 %423
    %427 = vset.pattern.permute.xlu0 0
    %428 = vperm.xlu0 %427, %v330
    %v429 = vpop.permute.xlu0 %428
    %432 = vset.pattern.permute.xlu0 0
    %433 = vperm.xlu0 %432, %v331
    %v434 = vpop.permute.xlu0 %433
    %437 = vset.pattern.permute.xlu0 0
    %438 = vperm.xlu0 %437, %v332
    %v439 = vpop.permute.xlu0 %438
    %442 = vset.pattern.permute.xlu0 0
    %443 = vperm.xlu0 %442, %v333
    %v444 = vpop.permute.xlu0 %443
    %447 = vset.pattern.permute.xlu0 0
    %448 = vperm.xlu0 %447, %v334
    %v449 = vpop.permute.xlu0 %448
    %452 = vset.pattern.permute.xlu0 0
    %453 = vperm.xlu0 %452, %v335
    %v454 = vpop.permute.xlu0 %453
    %457 = vset.pattern.permute.xlu0 0
    %458 = vperm.xlu0 %457, %v336
    %v459 = vpop.permute.xlu0 %458
    %462 = vset.pattern.permute.xlu0 0
    %463 = vperm.xlu0 %462, %v337
    %v464 = vpop.permute.xlu0 %463
    %467 = vset.pattern.permute.xlu0 0
    %468 = vperm.xlu0 %467, %v338
    %v469 = vpop.permute.xlu0 %468
    %472 = vset.pattern.permute.xlu0 0
    %473 = vperm.xlu0 %472, %v339
    %v474 = vpop.permute.xlu0 %473
    %477 = vset.pattern.permute.xlu0 0
    %478 = vperm.xlu0 %477, %v340
    %v479 = vpop.permute.xlu0 %478
    %482 = vset.pattern.permute.xlu0 0
    %483 = vperm.xlu0 %482, %v341
    %v484 = vpop.permute.xlu0 %483
    %v486 = vmul.f32 %v390, %v409
    %v487 = vmul.f32 %v391, %v414
    %v488 = vmul.f32 %v392, %v419
    %v489 = vmul.f32 %v393, %v424
    %v490 = vmul.f32 %v394, %v429
    %v491 = vmul.f32 %v395, %v434
    %v492 = vmul.f32 %v396, %v439
    %v493 = vmul.f32 %v397, %v444
    %v494 = vmul.f32 %v398, %v449
    %v495 = vmul.f32 %v399, %v454
    %v496 = vmul.f32 %v400, %v459
    %v497 = vmul.f32 %v401, %v464
    %v498 = vmul.f32 %v402, %v469
    %v499 = vmul.f32 %v403, %v474
    %v500 = vmul.f32 %v404, %v479
    %v501 = vmul.f32 %v405, %v484
    %v502 = vld [vmem:[%s4] sm:$0x1]
    %v504 = vlaneseq
    %v505 = vshrl.u32 %v504, 7
    %v506 = vsub.s32 0, %v505
    %v507 = vrot.slane %v502, %v506
    %v509 = vadd.f32 %v486, %v507
    %v510 = vadd.f32 %v487, %v507
    %v511 = vadd.f32 %v488, %v507
    %v512 = vadd.f32 %v489, %v507
    %v513 = vadd.f32 %v490, %v507
    %v514 = vadd.f32 %v491, %v507
    %v515 = vadd.f32 %v492, %v507
    %v516 = vadd.f32 %v493, %v507
    %v517 = vadd.f32 %v494, %v507
    %v518 = vadd.f32 %v495, %v507
    %v519 = vadd.f32 %v496, %v507
    %v520 = vadd.f32 %v497, %v507
    %v521 = vadd.f32 %v498, %v507
    %v522 = vadd.f32 %v499, %v507
    %v523 = vadd.f32 %v500, %v507
    %v524 = vadd.f32 %v501, %v507
    %v525 = vmax.f32 %v509, 0.0
    %v526 = vmax.f32 %v510, 0.0
    %v527 = vmax.f32 %v511, 0.0
    %v528 = vmax.f32 %v512, 0.0
    %v529 = vmax.f32 %v513, 0.0
    %v530 = vmax.f32 %v514, 0.0
    %v531 = vmax.f32 %v515, 0.0
    %v532 = vmax.f32 %v516, 0.0
    %v533 = vmax.f32 %v517, 0.0
    %v534 = vmax.f32 %v518, 0.0
    %v535 = vmax.f32 %v519, 0.0
    %v536 = vmax.f32 %v520, 0.0
    %v537 = vmax.f32 %v521, 0.0
    %v538 = vmax.f32 %v522, 0.0
    %v539 = vmax.f32 %v523, 0.0
    %v540 = vmax.f32 %v524, 0.0
    %541 = vadd.xlane.f32.xlu0 %v525
    %v542 = vpop.xlane.xlu0 %541
    %543 = vadd.xlane.f32.xlu0 %v526
    %v544 = vpop.xlane.xlu0 %543
    %545 = vadd.xlane.f32.xlu0 %v527
    %v546 = vpop.xlane.xlu0 %545
    %547 = vadd.xlane.f32.xlu0 %v528
    %v548 = vpop.xlane.xlu0 %547
    %549 = vadd.xlane.f32.xlu0 %v529
    %v550 = vpop.xlane.xlu0 %549
    %551 = vadd.xlane.f32.xlu0 %v530
    %v552 = vpop.xlane.xlu0 %551
    %553 = vadd.xlane.f32.xlu0 %v531
    %v554 = vpop.xlane.xlu0 %553
    %555 = vadd.xlane.f32.xlu0 %v532
    %v556 = vpop.xlane.xlu0 %555
    %557 = vadd.xlane.f32.xlu0 %v533
    %v558 = vpop.xlane.xlu0 %557
    %559 = vadd.xlane.f32.xlu0 %v534
    %v560 = vpop.xlane.xlu0 %559
    %561 = vadd.xlane.f32.xlu0 %v535
    %v562 = vpop.xlane.xlu0 %561
    %563 = vadd.xlane.f32.xlu0 %v536
    %v564 = vpop.xlane.xlu0 %563
    %565 = vadd.xlane.f32.xlu0 %v537
    %v566 = vpop.xlane.xlu0 %565
    %567 = vadd.xlane.f32.xlu0 %v538
    %v568 = vpop.xlane.xlu0 %567
    %569 = vadd.xlane.f32.xlu0 %v539
    %v570 = vpop.xlane.xlu0 %569
    %571 = vadd.xlane.f32.xlu0 %v540
    %v572 = vpop.xlane.xlu0 %571
    %v573 = vmul.f32 %v542, 0.03125
    %v574 = vmul.f32 %v544, 0.03125
    %v575 = vmul.f32 %v546, 0.03125
    %v576 = vmul.f32 %v548, 0.03125
    %v577 = vmul.f32 %v550, 0.03125
    %v578 = vmul.f32 %v552, 0.03125
    %v579 = vmul.f32 %v554, 0.03125
    %v580 = vmul.f32 %v556, 0.03125
    %v581 = vmul.f32 %v558, 0.03125
    %v582 = vmul.f32 %v560, 0.03125
    %v583 = vmul.f32 %v562, 0.03125
    %v584 = vmul.f32 %v564, 0.03125
    %v585 = vmul.f32 %v566, 0.03125
    %v586 = vmul.f32 %v568, 0.03125
    %v587 = vmul.f32 %v570, 0.03125
    %v588 = vmul.f32 %v572, 0.03125
    %v589 = vsub.f32 %v525, %v573
    %v590 = vsub.f32 %v526, %v574
    %v591 = vsub.f32 %v527, %v575
    %v592 = vsub.f32 %v528, %v576
    %v593 = vsub.f32 %v529, %v577
    %v594 = vsub.f32 %v530, %v578
    %v595 = vsub.f32 %v531, %v579
    %v596 = vsub.f32 %v532, %v580
    %v597 = vsub.f32 %v533, %v581
    %v598 = vsub.f32 %v534, %v582
    %v599 = vsub.f32 %v535, %v583
    %v600 = vsub.f32 %v536, %v584
    %v601 = vsub.f32 %v537, %v585
    %v602 = vsub.f32 %v538, %v586
    %v603 = vsub.f32 %v539, %v587
    %v604 = vsub.f32 %v540, %v588
    %v605 = vmul.f32 %v589, %v589
    %v606 = vmul.f32 %v590, %v590
    %v607 = vmul.f32 %v591, %v591
    %v608 = vmul.f32 %v592, %v592
    %v609 = vmul.f32 %v593, %v593
    %v610 = vmul.f32 %v594, %v594
    %v611 = vmul.f32 %v595, %v595
    %v612 = vmul.f32 %v596, %v596
    %v613 = vmul.f32 %v597, %v597
    %v614 = vmul.f32 %v598, %v598
    %v615 = vmul.f32 %v599, %v599
    %v616 = vmul.f32 %v600, %v600
    %v617 = vmul.f32 %v601, %v601
    %v618 = vmul.f32 %v602, %v602
    %v619 = vmul.f32 %v603, %v603
    %v620 = vmul.f32 %v604, %v604
    %621 = vadd.xlane.f32.xlu0 %v605
    %v622 = vpop.xlane.xlu0 %621
    %623 = vadd.xlane.f32.xlu0 %v606
    %v624 = vpop.xlane.xlu0 %623
    %625 = vadd.xlane.f32.xlu0 %v607
    %v626 = vpop.xlane.xlu0 %625
    %627 = vadd.xlane.f32.xlu0 %v608
    %v628 = vpop.xlane.xlu0 %627
    %629 = vadd.xlane.f32.xlu0 %v609
    %v630 = vpop.xlane.xlu0 %629
    %631 = vadd.xlane.f32.xlu0 %v610
    %v632 = vpop.xlane.xlu0 %631
    %633 = vadd.xlane.f32.xlu0 %v611
    %v634 = vpop.xlane.xlu0 %633
    %635 = vadd.xlane.f32.xlu0 %v612
    %v636 = vpop.xlane.xlu0 %635
    %637 = vadd.xlane.f32.xlu0 %v613
    %v638 = vpop.xlane.xlu0 %637
    %639 = vadd.xlane.f32.xlu0 %v614
    %v640 = vpop.xlane.xlu0 %639
    %641 = vadd.xlane.f32.xlu0 %v615
    %v642 = vpop.xlane.xlu0 %641
    %643 = vadd.xlane.f32.xlu0 %v616
    %v644 = vpop.xlane.xlu0 %643
    %645 = vadd.xlane.f32.xlu0 %v617
    %v646 = vpop.xlane.xlu0 %645
    %647 = vadd.xlane.f32.xlu0 %v618
    %v648 = vpop.xlane.xlu0 %647
    %649 = vadd.xlane.f32.xlu0 %v619
    %v650 = vpop.xlane.xlu0 %649
    %651 = vadd.xlane.f32.xlu0 %v620
    %v652 = vpop.xlane.xlu0 %651
    %v653 = vmul.f32 %v573, 96.0
    %v654 = vmul.f32 %v574, 96.0
    %v655 = vmul.f32 %v575, 96.0
    %v656 = vmul.f32 %v576, 96.0
    %v657 = vmul.f32 %v577, 96.0
    %v658 = vmul.f32 %v578, 96.0
    %v659 = vmul.f32 %v579, 96.0
    %v660 = vmul.f32 %v580, 96.0
    %v661 = vmul.f32 %v581, 96.0
    %v662 = vmul.f32 %v582, 96.0
    %v663 = vmul.f32 %v583, 96.0
    %v664 = vmul.f32 %v584, 96.0
    %v665 = vmul.f32 %v585, 96.0
    %v666 = vmul.f32 %v586, 96.0
    %v667 = vmul.f32 %v587, 96.0
    %v668 = vmul.f32 %v588, 96.0
    %v669 = vmul.f32 %v653, %v573
    %v670 = vmul.f32 %v654, %v574
    %v671 = vmul.f32 %v655, %v575
    %v672 = vmul.f32 %v656, %v576
    %v673 = vmul.f32 %v657, %v577
    %v674 = vmul.f32 %v658, %v578
    %v675 = vmul.f32 %v659, %v579
    %v676 = vmul.f32 %v660, %v580
    %v677 = vmul.f32 %v661, %v581
    %v678 = vmul.f32 %v662, %v582
    %v679 = vmul.f32 %v663, %v583
    %v680 = vmul.f32 %v664, %v584
    %v681 = vmul.f32 %v665, %v585
    %v682 = vmul.f32 %v666, %v586
    %v683 = vmul.f32 %v667, %v587
    %v684 = vmul.f32 %v668, %v588
    %v685 = vsub.f32 %v622, %v669
    %v686 = vsub.f32 %v624, %v670
    %v687 = vsub.f32 %v626, %v671
    %v688 = vsub.f32 %v628, %v672
    %v689 = vsub.f32 %v630, %v673
    %v690 = vsub.f32 %v632, %v674
    %v691 = vsub.f32 %v634, %v675
    %v692 = vsub.f32 %v636, %v676
    %v693 = vsub.f32 %v638, %v677
    %v694 = vsub.f32 %v640, %v678
    %v695 = vsub.f32 %v642, %v679
    %v696 = vsub.f32 %v644, %v680
    %v697 = vsub.f32 %v646, %v681
    %v698 = vsub.f32 %v648, %v682
    %v699 = vsub.f32 %v650, %v683
    %v700 = vsub.f32 %v652, %v684
    %v701 = vmul.f32 %v685, 0.03125
    %v702 = vmul.f32 %v686, 0.03125
    %v703 = vmul.f32 %v687, 0.03125
    %v704 = vmul.f32 %v688, 0.03125
    %v705 = vmul.f32 %v689, 0.03125
    %v706 = vmul.f32 %v690, 0.03125
    %v707 = vmul.f32 %v691, 0.03125
    %v708 = vmul.f32 %v692, 0.03125
    %v709 = vmul.f32 %v693, 0.03125
    %v710 = vmul.f32 %v694, 0.03125
    %v711 = vmul.f32 %v695, 0.03125
    %v712 = vmul.f32 %v696, 0.03125
    %v713 = vmul.f32 %v697, 0.03125
    %v714 = vmul.f32 %v698, 0.03125
    %v715 = vmul.f32 %v699, 0.03125
    %v716 = vmul.f32 %v700, 0.03125
    %v717 = vadd.f32 %v701, 1e-05
    %v718 = vadd.f32 %v702, 1e-05
    %v719 = vadd.f32 %v703, 1e-05
    %v720 = vadd.f32 %v704, 1e-05
    %v721 = vadd.f32 %v705, 1e-05
    %v722 = vadd.f32 %v706, 1e-05
    %v723 = vadd.f32 %v707, 1e-05
    %v724 = vadd.f32 %v708, 1e-05
    %v725 = vadd.f32 %v709, 1e-05
    %v726 = vadd.f32 %v710, 1e-05
    %v727 = vadd.f32 %v711, 1e-05
    %v728 = vadd.f32 %v712, 1e-05
    %v729 = vadd.f32 %v713, 1e-05
    %v730 = vadd.f32 %v714, 1e-05
    %v731 = vadd.f32 %v715, 1e-05
    %v732 = vadd.f32 %v716, 1e-05
    %v733 = vrsqrt.pop %v717
    %v734 = vrsqrt.pop %v718
    %v735 = vrsqrt.pop %v719
    %v736 = vrsqrt.pop %v720
    %v737 = vrsqrt.pop %v721
    %v738 = vrsqrt.pop %v722
    %v739 = vrsqrt.pop %v723
    %v740 = vrsqrt.pop %v724
    %v741 = vrsqrt.pop %v725
    %v742 = vrsqrt.pop %v726
    %v743 = vrsqrt.pop %v727
    %v744 = vrsqrt.pop %v728
    %v745 = vrsqrt.pop %v729
    %v746 = vrsqrt.pop %v730
    %v747 = vrsqrt.pop %v731
    %v748 = vrsqrt.pop %v732
    %v749 = vmul.f32 %v589, %v733
    %v750 = vmul.f32 %v590, %v734
    %v751 = vmul.f32 %v591, %v735
    %v752 = vmul.f32 %v592, %v736
    %v753 = vmul.f32 %v593, %v737
    %v754 = vmul.f32 %v594, %v738
    %v755 = vmul.f32 %v595, %v739
    %v756 = vmul.f32 %v596, %v740
    %v757 = vmul.f32 %v597, %v741
    %v758 = vmul.f32 %v598, %v742
    %v759 = vmul.f32 %v599, %v743
    %v760 = vmul.f32 %v600, %v744
    %v761 = vmul.f32 %v601, %v745
    %v762 = vmul.f32 %v602, %v746
    %v763 = vmul.f32 %v603, %v747
    %v764 = vmul.f32 %v604, %v748
    %v765 = vld [vmem:[%s5] sm:$0x1]
    %v767 = vlaneseq
    %v768 = vshrl.u32 %v767, 7
    %v769 = vsub.s32 0, %v768
    %v770 = vrot.slane %v765, %v769
    %v772 = vmul.f32 %v749, %v770
    %v773 = vmul.f32 %v750, %v770
    %v774 = vmul.f32 %v751, %v770
    %v775 = vmul.f32 %v752, %v770
    %v776 = vmul.f32 %v753, %v770
    %v777 = vmul.f32 %v754, %v770
    %v778 = vmul.f32 %v755, %v770
    %v779 = vmul.f32 %v756, %v770
    %v780 = vmul.f32 %v757, %v770
    %v781 = vmul.f32 %v758, %v770
    %v782 = vmul.f32 %v759, %v770
    %v783 = vmul.f32 %v760, %v770
    %v784 = vmul.f32 %v761, %v770
    %v785 = vmul.f32 %v762, %v770
    %v786 = vmul.f32 %v763, %v770
    %v787 = vmul.f32 %v764, %v770
    %v788 = vld [vmem:[%s6] sm:$0x1]
    %v790 = vlaneseq
    %v791 = vshrl.u32 %v790, 7
    %v792 = vsub.s32 0, %v791
    %v793 = vrot.slane %v788, %v792
    %v795 = vadd.f32 %v772, %v793
    %v796 = vadd.f32 %v773, %v793
    %v797 = vadd.f32 %v774, %v793
    %v798 = vadd.f32 %v775, %v793
    %v799 = vadd.f32 %v776, %v793
    %v800 = vadd.f32 %v777, %v793
    %v801 = vadd.f32 %v778, %v793
    %v802 = vadd.f32 %v779, %v793
    %v803 = vadd.f32 %v780, %v793
    %v804 = vadd.f32 %v781, %v793
    %v805 = vadd.f32 %v782, %v793
    %v806 = vadd.f32 %v783, %v793
    %v807 = vadd.f32 %v784, %v793
    %v808 = vadd.f32 %v785, %v793
    %v809 = vadd.f32 %v786, %v793
    %v810 = vadd.f32 %v787, %v793
    %v811 = vmul.f32 %v795, %v409
    %v812 = vmul.f32 %v796, %v414
    %v813 = vmul.f32 %v797, %v419
    %v814 = vmul.f32 %v798, %v424
    %v815 = vmul.f32 %v799, %v429
    %v816 = vmul.f32 %v800, %v434
    %v817 = vmul.f32 %v801, %v439
    %v818 = vmul.f32 %v802, %v444
    %v819 = vmul.f32 %v803, %v449
    %v820 = vmul.f32 %v804, %v454
    %v821 = vmul.f32 %v805, %v459
    %v822 = vmul.f32 %v806, %v464
    %v823 = vmul.f32 %v807, %v469
    %v824 = vmul.f32 %v808, %v474
    %v825 = vmul.f32 %v809, %v479
    %v826 = vmul.f32 %v810, %v484
    %v827 = vpack.c.bf16 %v812, %v811
    %v828 = vpack.c.bf16 %v814, %v813
    %v829 = vpack.c.bf16 %v816, %v815
    %v830 = vpack.c.bf16 %v818, %v817
    %v831 = vpack.c.bf16 %v820, %v819
    %v832 = vpack.c.bf16 %v822, %v821
    %v833 = vpack.c.bf16 %v824, %v823
    %v834 = vpack.c.bf16 %v826, %v825
    %v835 = vld [vmem:[%s7] sm:$0xf]
    %v836 = vld [vmem:[%s7 + $0x4] sm:$0xf]
    %v837 = vld [vmem:[%s7 + $0x8] sm:$0xf]
    %v838 = vld [vmem:[%s7 + $0xc] sm:$0xf]
    %v839 = vld [vmem:[%s7 + $0x10] sm:$0xf]
    %v840 = vld [vmem:[%s7 + $0x14] sm:$0xf]
    %v841 = vld [vmem:[%s7 + $0x18] sm:$0xf]
    %v842 = vld [vmem:[%s7 + $0x1c] sm:$0xf]
    %v843 = vld [vmem:[%s7 + $0x20] sm:$0xf]
    %v844 = vld [vmem:[%s7 + $0x24] sm:$0xf]
    %v845 = vld [vmem:[%s7 + $0x28] sm:$0xf]
    %v846 = vld [vmem:[%s7 + $0x2c] sm:$0xf]
    %v847 = vld [vmem:[%s7 + $0x30] sm:$0xf]
    %v848 = vld [vmem:[%s7 + $0x34] sm:$0xf]
    %v849 = vld [vmem:[%s7 + $0x38] sm:$0xf]
    %v850 = vld [vmem:[%s7 + $0x3c] sm:$0xf]
    %v867 = vunpack.c.l.b16 %v835
    %v868 = vunpack.c.l.b16 %v836
    %v869 = vunpack.c.l.b16 %v837
    %v870 = vunpack.c.l.b16 %v838
    %v871 = vunpack.c.l.b16 %v839
    %v872 = vunpack.c.l.b16 %v840
    %v873 = vunpack.c.l.b16 %v841
    %v874 = vunpack.c.l.b16 %v842
    %v875 = vunpack.c.l.b16 %v843
    %v876 = vunpack.c.l.b16 %v844
    %v877 = vunpack.c.l.b16 %v845
    %v878 = vunpack.c.l.b16 %v846
    %v879 = vunpack.c.l.b16 %v847
    %v880 = vunpack.c.l.b16 %v848
    %v881 = vunpack.c.l.b16 %v849
    %v882 = vunpack.c.l.b16 %v850
    %v883 = vpack.c.b16 %v868, %v867
    %v884 = vpack.c.b16 %v870, %v869
    %v885 = vpack.c.b16 %v872, %v871
    %v886 = vpack.c.b16 %v874, %v873
    %v887 = vpack.c.b16 %v876, %v875
    %v888 = vpack.c.b16 %v878, %v877
    %v889 = vpack.c.b16 %v880, %v879
    %v890 = vpack.c.b16 %v882, %v881
    %899 = vmatprep.subr.bf16.mxu0 0
    %900 = vmatpush1.bf16.msra.mxu0 %v890
    %901 = vmatprep.subr.bf16.mxu0 0
    %902 = vmatpush1.bf16.msra.mxu0 %v889
    %903 = vmatprep.subr.bf16.mxu0 0
    %904 = vmatpush1.bf16.msra.mxu0 %v888
    %905 = vmatprep.subr.bf16.mxu0 0
    %906 = vmatpush1.bf16.msra.mxu0 %v887
    %907 = vmatprep.subr.bf16.mxu0 0
    %908 = vmatpush1.bf16.msra.mxu0 %v886
    %909 = vmatprep.subr.bf16.mxu0 0
    %910 = vmatpush1.bf16.msra.mxu0 %v885
    %911 = vmatprep.subr.bf16.mxu0 0
    %912 = vmatpush1.bf16.msra.mxu0 %v884
    %913 = vmatprep.subr.bf16.mxu0 0
    %914 = vmatpush1.bf16.msra.mxu0 %v883
    %915 = vmatprep.subr.bf16.mxu0 0
    %916 = vmatpush2.bf16.msra.mxu0 0
    %917 = vmatprep.subr.bf16.mxu0 0
    %918 = vmatpush2.bf16.msra.mxu0 0
    %919 = vmatprep.subr.bf16.mxu0 0
    %920 = vmatpush2.bf16.msra.mxu0 0
    %921 = vmatprep.subr.bf16.mxu0 0
    %922 = vmatpush2.bf16.msra.mxu0 0
    %923 = vmatprep.subr.bf16.mxu0 0
    %924 = vmatpush2.bf16.msra.mxu0 0
    %925 = vmatprep.subr.bf16.mxu0 0
    %926 = vmatpush2.bf16.msra.mxu0 0
    %927 = vmatprep.subr.bf16.mxu0 0
    %928 = vmatpush2.bf16.msra.mxu0 0
    %929 = vmatprep.subr.bf16.mxu0 0
    %930 = vmatpush2.bf16.msra.mxu0 0
    %931 = vmatprep.mubr.bf16.mxu0 0
    %932 = vmatmul.mubr.bf16.gmra.mxu0 %v827
    %v933 = vpop.f32.mrf.mxu0
    %v934 = vadd.f32 0.0, %v933
    %v935 = vpop.f32.mrf.mxu0
    %v936 = vpop.f32.mrf.mxu0
    %v937 = vadd.f32 0.0, %v936
    %v938 = vpop.f32.mrf.mxu0
    %939 = vmatprep.mubr.bf16.mxu0 0
    %940 = vmatmul.mubr.bf16.gmra.mxu0 %v828
    %v941 = vpop.f32.mrf.mxu0
    %v942 = vadd.f32 0.0, %v941
    %v943 = vpop.f32.mrf.mxu0
    %v944 = vpop.f32.mrf.mxu0
    %v945 = vadd.f32 0.0, %v944
    %v946 = vpop.f32.mrf.mxu0
    %947 = vmatprep.mubr.bf16.mxu0 0
    %948 = vmatmul.mubr.bf16.gmra.mxu0 %v829
    %v949 = vpop.f32.mrf.mxu0
    %v950 = vadd.f32 0.0, %v949
    %v951 = vpop.f32.mrf.mxu0
    %v952 = vpop.f32.mrf.mxu0
    %v953 = vadd.f32 0.0, %v952
    %v954 = vpop.f32.mrf.mxu0
    %955 = vmatprep.mubr.bf16.mxu0 0
    %956 = vmatmul.mubr.bf16.gmra.mxu0 %v830
    %v957 = vpop.f32.mrf.mxu0
    %v958 = vadd.f32 0.0, %v957
    %v959 = vpop.f32.mrf.mxu0
    %v960 = vpop.f32.mrf.mxu0
    %v961 = vadd.f32 0.0, %v960
    %v962 = vpop.f32.mrf.mxu0
    %963 = vmatprep.mubr.bf16.mxu0 0
    %964 = vmatmul.mubr.bf16.gmra.mxu0 %v831
    %v965 = vpop.f32.mrf.mxu0
    %v966 = vadd.f32 0.0, %v965
    %v967 = vpop.f32.mrf.mxu0
    %v968 = vpop.f32.mrf.mxu0
    %v969 = vadd.f32 0.0, %v968
    %v970 = vpop.f32.mrf.mxu0
    %971 = vmatprep.mubr.bf16.mxu0 0
    %972 = vmatmul.mubr.bf16.gmra.mxu0 %v832
    %v973 = vpop.f32.mrf.mxu0
    %v974 = vadd.f32 0.0, %v973
    %v975 = vpop.f32.mrf.mxu0
    %v976 = vpop.f32.mrf.mxu0
    %v977 = vadd.f32 0.0, %v976
    %v978 = vpop.f32.mrf.mxu0
    %979 = vmatprep.mubr.bf16.mxu0 0
    %980 = vmatmul.mubr.bf16.gmra.mxu0 %v833
    %v981 = vpop.f32.mrf.mxu0
    %v982 = vadd.f32 0.0, %v981
    %v983 = vpop.f32.mrf.mxu0
    %v984 = vpop.f32.mrf.mxu0
    %v985 = vadd.f32 0.0, %v984
    %v986 = vpop.f32.mrf.mxu0
    %987 = vmatprep.mubr.bf16.mxu0 0
    %988 = vmatmul.mubr.bf16.gmra.mxu0 %v834
    %v989 = vpop.f32.mrf.mxu0
    %v990 = vadd.f32 0.0, %v989
    %v991 = vpop.f32.mrf.mxu0
    %v992 = vpop.f32.mrf.mxu0
    %v993 = vadd.f32 0.0, %v992
    %v994 = vpop.f32.mrf.mxu0
    %995 = vdwg.mxu0
    %v996 = vpack.c.bf16 %v937, %v934
    %v997 = vpack.c.bf16 %v945, %v942
    %v998 = vpack.c.bf16 %v953, %v950
    %v999 = vpack.c.bf16 %v961, %v958
    %v1000 = vpack.c.bf16 %v969, %v966
    %v1001 = vpack.c.bf16 %v977, %v974
    %v1002 = vpack.c.bf16 %v985, %v982
    %v1003 = vpack.c.bf16 %v993, %v990
    %v1012 = vunpack.c.l.b16 %v996
    %v1013 = vunpack.c.h.b16 %v996
    %v1014 = vunpack.c.l.b16 %v997
    %v1015 = vunpack.c.h.b16 %v997
    %v1016 = vunpack.c.l.b16 %v998
    %v1017 = vunpack.c.h.b16 %v998
    %v1018 = vunpack.c.l.b16 %v999
    %v1019 = vunpack.c.h.b16 %v999
    %v1020 = vunpack.c.l.b16 %v1000
    %v1021 = vunpack.c.h.b16 %v1000
    %v1022 = vunpack.c.l.b16 %v1001
    %v1023 = vunpack.c.h.b16 %v1001
    %v1024 = vunpack.c.l.b16 %v1002
    %v1025 = vunpack.c.h.b16 %v1002
    %v1026 = vunpack.c.l.b16 %v1003
    %v1027 = vunpack.c.h.b16 %v1003
    %v1028 = vpack.c.b16 %v1012, %v1012
    %v1029 = vpack.c.b16 %v1013, %v1013
    %v1030 = vpack.c.b16 %v1014, %v1014
    %v1031 = vpack.c.b16 %v1015, %v1015
    %v1032 = vpack.c.b16 %v1016, %v1016
    %v1033 = vpack.c.b16 %v1017, %v1017
    %v1034 = vpack.c.b16 %v1018, %v1018
    %v1035 = vpack.c.b16 %v1019, %v1019
    %v1036 = vpack.c.b16 %v1020, %v1020
    %v1037 = vpack.c.b16 %v1021, %v1021
    %v1038 = vpack.c.b16 %v1022, %v1022
    %v1039 = vpack.c.b16 %v1023, %v1023
    %v1040 = vpack.c.b16 %v1024, %v1024
    %v1041 = vpack.c.b16 %v1025, %v1025
    %v1042 = vpack.c.b16 %v1026, %v1026
    %v1043 = vpack.c.b16 %v1027, %v1027
    %1060 = vst [vmem:[%s8] sm:$0xf] %v1028
    %1061 = vst [vmem:[%s8 + $0x4] sm:$0xf] %v1029
    %1062 = vst [vmem:[%s8 + $0x8] sm:$0xf] %v1030
    %1063 = vst [vmem:[%s8 + $0xc] sm:$0xf] %v1031
    %1064 = vst [vmem:[%s8 + $0x10] sm:$0xf] %v1032
    %1065 = vst [vmem:[%s8 + $0x14] sm:$0xf] %v1033
    %1066 = vst [vmem:[%s8 + $0x18] sm:$0xf] %v1034
    %1067 = vst [vmem:[%s8 + $0x1c] sm:$0xf] %v1035
    %1068 = vst [vmem:[%s8 + $0x20] sm:$0xf] %v1036
    %1069 = vst [vmem:[%s8 + $0x24] sm:$0xf] %v1037
    %1070 = vst [vmem:[%s8 + $0x28] sm:$0xf] %v1038
    %1071 = vst [vmem:[%s8 + $0x2c] sm:$0xf] %v1039
    %1072 = vst [vmem:[%s8 + $0x30] sm:$0xf] %v1040
    %1073 = vst [vmem:[%s8 + $0x34] sm:$0xf] %v1041
    %1074 = vst [vmem:[%s8 + $0x38] sm:$0xf] %v1042
    %1075 = vst [vmem:[%s8 + $0x3c] sm:$0xf] %v1043
  $region41: #{gnn_stack_forward.4} parent=0 // pred_fallthru
    _
  // Predicated region
  $region42: #{gnn_stack_forward.4} parent=0 // pred_check
    _
  $region43: #{gnn_stack_forward.4} parent=0 // pred_check_branch
    %1077 = sbr.rel (0) target = $region45
  $region44: #{gnn_stack_forward.4} parent=0 // pred_region
    _
  $region45: #{gnn_stack_forward.4} parent=0 // pred_fallthru
    _
  // Predicated region
  $region46: #{gnn_stack_forward.4} parent=0 // pred_check
    _
  $region47: #{gnn_stack_forward.4} parent=0 // pred_check_branch
    %1079 = sbr.rel (0) target = $region49
  $region48: #{gnn_stack_forward.4} parent=0 // pred_region
    _
  $region49: #{gnn_stack_forward.4} parent=0 // pred_fallthru
    _

// kernel: gnn_stack_forward.5
$region0: #{gnn_stack_forward.5}
  #allocation0 [shape = 'u32[]', space=smem, size = 0x4, offset = 0x4, fixed_abs, tag = 'smem constant byte address 0x4 - core index']
  #allocation1 [shape = 'u32[144,128]{1,0:T(1,128)}', space=vmem, size = 0x12000, scoped, tag = 'internal scratch']
  #allocation2 [shape = 'f32[128,128]{1,0:T(8,128)}', space=vmem, size = 0x10000, scoped, tag = 'scratch operand']
  %s0 = inlined_call_operand.vmem [shape: bf16[128,128], index: 0, kind: input, shape index: {}]
  %s1 = inlined_call_operand.vmem [shape: bf16[128,128], index: 1, kind: input, shape index: {}, may-alias: {1,2}]
  %s2 = inlined_call_operand.vmem [shape: bf16[128,128], index: 2, kind: input, shape index: {}, may-alias: {1,2}]
  %s3 = inlined_call_operand.vmem [shape: f32[128,1], index: 3, kind: input, shape index: {}]
  %s4 = inlined_call_operand.vmem [shape: f32[1,128], index: 4, kind: input, shape index: {}]
  %s5 = inlined_call_operand.vmem [shape: bf16[128,128], index: 5, kind: input, shape index: {}]
  %s6 = inlined_call_operand.vmem [shape: f32[1,128], index: 6, kind: input, shape index: {}]
  %s7 = inlined_call_operand.vmem [shape: bf16[128,128], index: 7, kind: input, shape index: {}]
  %s8 = inlined_call_operand.vmem [shape: f32[1,128], index: 8, kind: input, shape index: {}]
  %s9 = inlined_call_operand.vmem [shape: f32[128,128], index: 9, kind: output, shape index: {0}]
  %s10 = inlined_call_operand.vmem [shape: f32[128,128], index: 10, kind: output, shape index: {1}]
  %11 = xla_tuple %s9, %s10
  %s12 = sld [smem:[#allocation0]]
  $region62: #{gnn_stack_forward.5} parent=0
    _
  %s14 = ssub.s32 1, %s12
  %s15 = scalar_select 0, %s14, %s12
  // Predicated region
  $region2: #{gnn_stack_forward.5} parent=0 // pred_check
    _
  $region3: #{gnn_stack_forward.5} parent=0 // pred_check_branch
    %17 = sbr.rel (0) target = $region5
  $region4: #{gnn_stack_forward.5} parent=0 // pred_region
    _
  $region5: #{gnn_stack_forward.5} parent=0 // pred_fallthru
    _
  // Predicated region
  $region6: #{gnn_stack_forward.5} parent=0 // pred_check
    _
  $region7: #{gnn_stack_forward.5} parent=0 // pred_check_branch
    %19 = sbr.rel (0) target = $region9
  $region8: #{gnn_stack_forward.5} parent=0 // pred_region
    _
  $region9: #{gnn_stack_forward.5} parent=0 // pred_fallthru
    _
  // Predicated region
  $region10: #{gnn_stack_forward.5} parent=0 // pred_check
    _
  $region11: #{gnn_stack_forward.5} parent=0 // pred_check_branch
    %21 = sbr.rel (0) target = $region13
  $region12: #{gnn_stack_forward.5} parent=0 // pred_region
    _
  $region13: #{gnn_stack_forward.5} parent=0 // pred_fallthru
    _
  // Predicated region
  $region14: #{gnn_stack_forward.5} parent=0 // pred_check
    _
  $region15: #{gnn_stack_forward.5} parent=0 // pred_check_branch
    %23 = sbr.rel (0) target = $region17
  $region16: #{gnn_stack_forward.5} parent=0 // pred_region
    _
  $region17: #{gnn_stack_forward.5} parent=0 // pred_fallthru
    _
  // Predicated region
  $region18: #{gnn_stack_forward.5} parent=0 // pred_check
    _
  $region19: #{gnn_stack_forward.5} parent=0 // pred_check_branch
    %25 = sbr.rel (0) target = $region21
  $region20: #{gnn_stack_forward.5} parent=0 // pred_region
    _
  $region21: #{gnn_stack_forward.5} parent=0 // pred_fallthru
    _
  // Predicated region
  $region22: #{gnn_stack_forward.5} parent=0 // pred_check
    _
  $region23: #{gnn_stack_forward.5} parent=0 // pred_check_branch
    %27 = sbr.rel (0) target = $region25
  $region24: #{gnn_stack_forward.5} parent=0 // pred_region
    _
  $region25: #{gnn_stack_forward.5} parent=0 // pred_fallthru
    _
  // Predicated region
  $region26: #{gnn_stack_forward.5} parent=0 // pred_check
    _
  $region27: #{gnn_stack_forward.5} parent=0 // pred_check_branch
    %29 = sbr.rel (0) target = $region29
  $region28: #{gnn_stack_forward.5} parent=0 // pred_region
    _
  $region29: #{gnn_stack_forward.5} parent=0 // pred_fallthru
    _
  // Predicated region
  $region30: #{gnn_stack_forward.5} parent=0 // pred_check
    _
  $region31: #{gnn_stack_forward.5} parent=0 // pred_check_branch
    %31 = sbr.rel (0) target = $region33
  $region32: #{gnn_stack_forward.5} parent=0 // pred_region
    _
  $region33: #{gnn_stack_forward.5} parent=0 // pred_fallthru
    _
  // Predicated region
  $region34: #{gnn_stack_forward.5} parent=0 // pred_check
    _
  $region35: #{gnn_stack_forward.5} parent=0 // pred_check_branch
    %33 = sbr.rel (0) target = $region37
  $region36: #{gnn_stack_forward.5} parent=0 // pred_region
    _
  $region37: #{gnn_stack_forward.5} parent=0 // pred_fallthru
    _
  %p35 = scmp.eq.s32.totalorder 0, 0
  // Predicated region
  $region38: #{gnn_stack_forward.5} parent=0 // pred_check
    %p36 = pneg %p35
  $region39: #{gnn_stack_forward.5} parent=0 // pred_check_branch
    %38 = sbr.rel (%p36) target = $region41
  $region40: #{gnn_stack_forward.5} parent=0 // pred_region
    %39 = vst [vmem:[#allocation2] sm:$0xff] 0.0
    %40 = vst [vmem:[#allocation2 + $0x8] sm:$0xff] 0.0
    %41 = vst [vmem:[#allocation2 + $0x10] sm:$0xff] 0.0
    %42 = vst [vmem:[#allocation2 + $0x18] sm:$0xff] 0.0
    %43 = vst [vmem:[#allocation2 + $0x20] sm:$0xff] 0.0
    %44 = vst [vmem:[#allocation2 + $0x28] sm:$0xff] 0.0
    %45 = vst [vmem:[#allocation2 + $0x30] sm:$0xff] 0.0
    %46 = vst [vmem:[#allocation2 + $0x38] sm:$0xff] 0.0
    %47 = vst [vmem:[#allocation2 + $0x40] sm:$0xff] 0.0
    %48 = vst [vmem:[#allocation2 + $0x48] sm:$0xff] 0.0
    %49 = vst [vmem:[#allocation2 + $0x50] sm:$0xff] 0.0
    %50 = vst [vmem:[#allocation2 + $0x58] sm:$0xff] 0.0
    %51 = vst [vmem:[#allocation2 + $0x60] sm:$0xff] 0.0
    %52 = vst [vmem:[#allocation2 + $0x68] sm:$0xff] 0.0
    %53 = vst [vmem:[#allocation2 + $0x70] sm:$0xff] 0.0
    %54 = vst [vmem:[#allocation2 + $0x78] sm:$0xff] 0.0
  $region41: #{gnn_stack_forward.5} parent=0 // pred_fallthru
    _
  %v55 = vld [vmem:[#allocation2] sm:$0xff]
  %v56 = vld [vmem:[#allocation2 + $0x8] sm:$0xff]
  %v57 = vld [vmem:[#allocation2 + $0x10] sm:$0xff]
  %v58 = vld [vmem:[#allocation2 + $0x18] sm:$0xff]
  %v59 = vld [vmem:[#allocation2 + $0x20] sm:$0xff]
  %v60 = vld [vmem:[#allocation2 + $0x28] sm:$0xff]
  %v61 = vld [vmem:[#allocation2 + $0x30] sm:$0xff]
  %v62 = vld [vmem:[#allocation2 + $0x38] sm:$0xff]
  %v63 = vld [vmem:[#allocation2 + $0x40] sm:$0xff]
  %v64 = vld [vmem:[#allocation2 + $0x48] sm:$0xff]
  %v65 = vld [vmem:[#allocation2 + $0x50] sm:$0xff]
  %v66 = vld [vmem:[#allocation2 + $0x58] sm:$0xff]
  %v67 = vld [vmem:[#allocation2 + $0x60] sm:$0xff]
  %v68 = vld [vmem:[#allocation2 + $0x68] sm:$0xff]
  %v69 = vld [vmem:[#allocation2 + $0x70] sm:$0xff]
  %v70 = vld [vmem:[#allocation2 + $0x78] sm:$0xff]
  %v71 = vld [vmem:[%s0] sm:$0xf]
  %v72 = vld [vmem:[%s0 + $0x4] sm:$0xf]
  %v73 = vld [vmem:[%s0 + $0x8] sm:$0xf]
  %v74 = vld [vmem:[%s0 + $0xc] sm:$0xf]
  %v75 = vld [vmem:[%s0 + $0x10] sm:$0xf]
  %v76 = vld [vmem:[%s0 + $0x14] sm:$0xf]
  %v77 = vld [vmem:[%s0 + $0x18] sm:$0xf]
  %v78 = vld [vmem:[%s0 + $0x1c] sm:$0xf]
  %v79 = vld [vmem:[%s0 + $0x20] sm:$0xf]
  %v80 = vld [vmem:[%s0 + $0x24] sm:$0xf]
  %v81 = vld [vmem:[%s0 + $0x28] sm:$0xf]
  %v82 = vld [vmem:[%s0 + $0x2c] sm:$0xf]
  %v83 = vld [vmem:[%s0 + $0x30] sm:$0xf]
  %v84 = vld [vmem:[%s0 + $0x34] sm:$0xf]
  %v85 = vld [vmem:[%s0 + $0x38] sm:$0xf]
  %v86 = vld [vmem:[%s0 + $0x3c] sm:$0xf]
  %v87 = vld [vmem:[%s1] sm:$0xf]
  %v88 = vld [vmem:[%s1 + $0x4] sm:$0xf]
  %v89 = vld [vmem:[%s1 + $0x8] sm:$0xf]
  %v90 = vld [vmem:[%s1 + $0xc] sm:$0xf]
  %v91 = vld [vmem:[%s1 + $0x10] sm:$0xf]
  %v92 = vld [vmem:[%s1 + $0x14] sm:$0xf]
  %v93 = vld [vmem:[%s1 + $0x18] sm:$0xf]
  %v94 = vld [vmem:[%s1 + $0x1c] sm:$0xf]
  %v95 = vld [vmem:[%s1 + $0x20] sm:$0xf]
  %v96 = vld [vmem:[%s1 + $0x24] sm:$0xf]
  %v97 = vld [vmem:[%s1 + $0x28] sm:$0xf]
  %v98 = vld [vmem:[%s1 + $0x2c] sm:$0xf]
  %v99 = vld [vmem:[%s1 + $0x30] sm:$0xf]
  %v100 = vld [vmem:[%s1 + $0x34] sm:$0xf]
  %v101 = vld [vmem:[%s1 + $0x38] sm:$0xf]
  %v102 = vld [vmem:[%s1 + $0x3c] sm:$0xf]
  %v119 = vunpack.c.l.b16 %v71
  %v120 = vunpack.c.l.b16 %v72
  %v121 = vunpack.c.l.b16 %v73
  %v122 = vunpack.c.l.b16 %v74
  %v123 = vunpack.c.l.b16 %v75
  %v124 = vunpack.c.l.b16 %v76
  %v125 = vunpack.c.l.b16 %v77
  %v126 = vunpack.c.l.b16 %v78
  %v127 = vunpack.c.l.b16 %v79
  %v128 = vunpack.c.l.b16 %v80
  %v129 = vunpack.c.l.b16 %v81
  %v130 = vunpack.c.l.b16 %v82
  %v131 = vunpack.c.l.b16 %v83
  %v132 = vunpack.c.l.b16 %v84
  %v133 = vunpack.c.l.b16 %v85
  %v134 = vunpack.c.l.b16 %v86
  %v135 = vpack.c.b16 %v120, %v119
  %v136 = vpack.c.b16 %v122, %v121
  %v137 = vpack.c.b16 %v124, %v123
  %v138 = vpack.c.b16 %v126, %v125
  %v139 = vpack.c.b16 %v128, %v127
  %v140 = vpack.c.b16 %v130, %v129
  %v141 = vpack.c.b16 %v132, %v131
  %v142 = vpack.c.b16 %v134, %v133
  %v167 = vunpack.c.l.b16 %v87
  %v168 = vunpack.c.l.b16 %v88
  %v169 = vunpack.c.l.b16 %v89
  %v170 = vunpack.c.l.b16 %v90
  %v171 = vunpack.c.l.b16 %v91
  %v172 = vunpack.c.l.b16 %v92
  %v173 = vunpack.c.l.b16 %v93
  %v174 = vunpack.c.l.b16 %v94
  %v175 = vunpack.c.l.b16 %v95
  %v176 = vunpack.c.l.b16 %v96
  %v177 = vunpack.c.l.b16 %v97
  %v178 = vunpack.c.l.b16 %v98
  %v179 = vunpack.c.l.b16 %v99
  %v180 = vunpack.c.l.b16 %v100
  %v181 = vunpack.c.l.b16 %v101
  %v182 = vunpack.c.l.b16 %v102
  %v183 = vpack.c.b16 %v168, %v167
  %v184 = vpack.c.b16 %v170, %v169
  %v185 = vpack.c.b16 %v172, %v171
  %v186 = vpack.c.b16 %v174, %v173
  %v187 = vpack.c.b16 %v176, %v175
  %v188 = vpack.c.b16 %v178, %v177
  %v189 = vpack.c.b16 %v180, %v179
  %v190 = vpack.c.b16 %v182, %v181
  %199 = vmatprep.subr.bf16.mxu0 0
  %200 = vmatpush1.bf16.msra.mxu0 %v190
  %201 = vmatprep.subr.bf16.mxu0 0
  %202 = vmatpush1.bf16.msra.mxu0 %v189
  %203 = vmatprep.subr.bf16.mxu0 0
  %204 = vmatpush1.bf16.msra.mxu0 %v188
  %205 = vmatprep.subr.bf16.mxu0 0
  %206 = vmatpush1.bf16.msra.mxu0 %v187
  %207 = vmatprep.subr.bf16.mxu0 0
  %208 = vmatpush1.bf16.msra.mxu0 %v186
  %209 = vmatprep.subr.bf16.mxu0 0
  %210 = vmatpush1.bf16.msra.mxu0 %v185
  %211 = vmatprep.subr.bf16.mxu0 0
  %212 = vmatpush1.bf16.msra.mxu0 %v184
  %213 = vmatprep.subr.bf16.mxu0 0
  %214 = vmatpush1.bf16.msra.mxu0 %v183
  %215 = vmatprep.subr.bf16.mxu0 0
  %216 = vmatpush2.bf16.msra.mxu0 0
  %217 = vmatprep.subr.bf16.mxu0 0
  %218 = vmatpush2.bf16.msra.mxu0 0
  %219 = vmatprep.subr.bf16.mxu0 0
  %220 = vmatpush2.bf16.msra.mxu0 0
  %221 = vmatprep.subr.bf16.mxu0 0
  %222 = vmatpush2.bf16.msra.mxu0 0
  %223 = vmatprep.subr.bf16.mxu0 0
  %224 = vmatpush2.bf16.msra.mxu0 0
  %225 = vmatprep.subr.bf16.mxu0 0
  %226 = vmatpush2.bf16.msra.mxu0 0
  %227 = vmatprep.subr.bf16.mxu0 0
  %228 = vmatpush2.bf16.msra.mxu0 0
  %229 = vmatprep.subr.bf16.mxu0 0
  %230 = vmatpush2.bf16.msra.mxu0 0
  %231 = vmatprep.mubr.bf16.mxu0 0
  %232 = vmatmul.mubr.bf16.gmra.mxu0 %v135
  %v233 = vpop.f32.mrf.mxu0
  %v234 = vadd.f32 0.0, %v233
  %v235 = vpop.f32.mrf.mxu0
  %v236 = vpop.f32.mrf.mxu0
  %v237 = vadd.f32 0.0, %v236
  %v238 = vpop.f32.mrf.mxu0
  %239 = vmatprep.mubr.bf16.mxu0 0
  %240 = vmatmul.mubr.bf16.gmra.mxu0 %v136
  %v241 = vpop.f32.mrf.mxu0
  %v242 = vadd.f32 0.0, %v241
  %v243 = vpop.f32.mrf.mxu0
  %v244 = vpop.f32.mrf.mxu0
  %v245 = vadd.f32 0.0, %v244
  %v246 = vpop.f32.mrf.mxu0
  %247 = vmatprep.mubr.bf16.mxu0 0
  %248 = vmatmul.mubr.bf16.gmra.mxu0 %v137
  %v249 = vpop.f32.mrf.mxu0
  %v250 = vadd.f32 0.0, %v249
  %v251 = vpop.f32.mrf.mxu0
  %v252 = vpop.f32.mrf.mxu0
  %v253 = vadd.f32 0.0, %v252
  %v254 = vpop.f32.mrf.mxu0
  %255 = vmatprep.mubr.bf16.mxu0 0
  %256 = vmatmul.mubr.bf16.gmra.mxu0 %v138
  %v257 = vpop.f32.mrf.mxu0
  %v258 = vadd.f32 0.0, %v257
  %v259 = vpop.f32.mrf.mxu0
  %v260 = vpop.f32.mrf.mxu0
  %v261 = vadd.f32 0.0, %v260
  %v262 = vpop.f32.mrf.mxu0
  %263 = vmatprep.mubr.bf16.mxu0 0
  %264 = vmatmul.mubr.bf16.gmra.mxu0 %v139
  %v265 = vpop.f32.mrf.mxu0
  %v266 = vadd.f32 0.0, %v265
  %v267 = vpop.f32.mrf.mxu0
  %v268 = vpop.f32.mrf.mxu0
  %v269 = vadd.f32 0.0, %v268
  %v270 = vpop.f32.mrf.mxu0
  %271 = vmatprep.mubr.bf16.mxu0 0
  %272 = vmatmul.mubr.bf16.gmra.mxu0 %v140
  %v273 = vpop.f32.mrf.mxu0
  %v274 = vadd.f32 0.0, %v273
  %v275 = vpop.f32.mrf.mxu0
  %v276 = vpop.f32.mrf.mxu0
  %v277 = vadd.f32 0.0, %v276
  %v278 = vpop.f32.mrf.mxu0
  %279 = vmatprep.mubr.bf16.mxu0 0
  %280 = vmatmul.mubr.bf16.gmra.mxu0 %v141
  %v281 = vpop.f32.mrf.mxu0
  %v282 = vadd.f32 0.0, %v281
  %v283 = vpop.f32.mrf.mxu0
  %v284 = vpop.f32.mrf.mxu0
  %v285 = vadd.f32 0.0, %v284
  %v286 = vpop.f32.mrf.mxu0
  %287 = vmatprep.mubr.bf16.mxu0 0
  %288 = vmatmul.mubr.bf16.gmra.mxu0 %v142
  %v289 = vpop.f32.mrf.mxu0
  %v290 = vadd.f32 0.0, %v289
  %v291 = vpop.f32.mrf.mxu0
  %v292 = vpop.f32.mrf.mxu0
  %v293 = vadd.f32 0.0, %v292
  %v294 = vpop.f32.mrf.mxu0
  %295 = vdwg.mxu0
  %v296 = vadd.f32 %v55, %v234
  %v297 = vadd.f32 %v56, %v237
  %v298 = vadd.f32 %v57, %v242
  %v299 = vadd.f32 %v58, %v245
  %v300 = vadd.f32 %v59, %v250
  %v301 = vadd.f32 %v60, %v253
  %v302 = vadd.f32 %v61, %v258
  %v303 = vadd.f32 %v62, %v261
  %v304 = vadd.f32 %v63, %v266
  %v305 = vadd.f32 %v64, %v269
  %v306 = vadd.f32 %v65, %v274
  %v307 = vadd.f32 %v66, %v277
  %v308 = vadd.f32 %v67, %v282
  %v309 = vadd.f32 %v68, %v285
  %v310 = vadd.f32 %v69, %v290
  %v311 = vadd.f32 %v70, %v293
  %312 = vst [vmem:[#allocation2] sm:$0xff] %v296
  %313 = vst [vmem:[#allocation2 + $0x8] sm:$0xff] %v297
  %314 = vst [vmem:[#allocation2 + $0x10] sm:$0xff] %v298
  %315 = vst [vmem:[#allocation2 + $0x18] sm:$0xff] %v299
  %316 = vst [vmem:[#allocation2 + $0x20] sm:$0xff] %v300
  %317 = vst [vmem:[#allocation2 + $0x28] sm:$0xff] %v301
  %318 = vst [vmem:[#allocation2 + $0x30] sm:$0xff] %v302
  %319 = vst [vmem:[#allocation2 + $0x38] sm:$0xff] %v303
  %320 = vst [vmem:[#allocation2 + $0x40] sm:$0xff] %v304
  %321 = vst [vmem:[#allocation2 + $0x48] sm:$0xff] %v305
  %322 = vst [vmem:[#allocation2 + $0x50] sm:$0xff] %v306
  %323 = vst [vmem:[#allocation2 + $0x58] sm:$0xff] %v307
  %324 = vst [vmem:[#allocation2 + $0x60] sm:$0xff] %v308
  %325 = vst [vmem:[#allocation2 + $0x68] sm:$0xff] %v309
  %326 = vst [vmem:[#allocation2 + $0x70] sm:$0xff] %v310
  %327 = vst [vmem:[#allocation2 + $0x78] sm:$0xff] %v311
  // Predicated region
  $region42: #{gnn_stack_forward.5} parent=0 // pred_check
    %p328 = pneg %p35
  $region43: #{gnn_stack_forward.5} parent=0 // pred_check_branch
    %330 = sbr.rel (%p328) target = $region45
  $region44: #{gnn_stack_forward.5} parent=0 // pred_region
    %v331 = vld [vmem:[#allocation2] sm:$0xff]
    %v332 = vld [vmem:[#allocation2 + $0x8] sm:$0xff]
    %v333 = vld [vmem:[#allocation2 + $0x10] sm:$0xff]
    %v334 = vld [vmem:[#allocation2 + $0x18] sm:$0xff]
    %v335 = vld [vmem:[#allocation2 + $0x20] sm:$0xff]
    %v336 = vld [vmem:[#allocation2 + $0x28] sm:$0xff]
    %v337 = vld [vmem:[#allocation2 + $0x30] sm:$0xff]
    %v338 = vld [vmem:[#allocation2 + $0x38] sm:$0xff]
    %v339 = vld [vmem:[#allocation2 + $0x40] sm:$0xff]
    %v340 = vld [vmem:[#allocation2 + $0x48] sm:$0xff]
    %v341 = vld [vmem:[#allocation2 + $0x50] sm:$0xff]
    %v342 = vld [vmem:[#allocation2 + $0x58] sm:$0xff]
    %v343 = vld [vmem:[#allocation2 + $0x60] sm:$0xff]
    %v344 = vld [vmem:[#allocation2 + $0x68] sm:$0xff]
    %v345 = vld [vmem:[#allocation2 + $0x70] sm:$0xff]
    %v346 = vld [vmem:[#allocation2 + $0x78] sm:$0xff]
    %v347 = vld [vmem:[%s2] sm:$0xf]
    %v348 = vld [vmem:[%s2 + $0x4] sm:$0xf]
    %v349 = vld [vmem:[%s2 + $0x8] sm:$0xf]
    %v350 = vld [vmem:[%s2 + $0xc] sm:$0xf]
    %v351 = vld [vmem:[%s2 + $0x10] sm:$0xf]
    %v352 = vld [vmem:[%s2 + $0x14] sm:$0xf]
    %v353 = vld [vmem:[%s2 + $0x18] sm:$0xf]
    %v354 = vld [vmem:[%s2 + $0x1c] sm:$0xf]
    %v355 = vld [vmem:[%s2 + $0x20] sm:$0xf]
    %v356 = vld [vmem:[%s2 + $0x24] sm:$0xf]
    %v357 = vld [vmem:[%s2 + $0x28] sm:$0xf]
    %v358 = vld [vmem:[%s2 + $0x2c] sm:$0xf]
    %v359 = vld [vmem:[%s2 + $0x30] sm:$0xf]
    %v360 = vld [vmem:[%s2 + $0x34] sm:$0xf]
    %v361 = vld [vmem:[%s2 + $0x38] sm:$0xf]
    %v362 = vld [vmem:[%s2 + $0x3c] sm:$0xf]
    %v363 = vunpack.c.l.bf16 %v347
    %v364 = vunpack.c.l.bf16 %v348
    %v365 = vunpack.c.l.bf16 %v349
    %v366 = vunpack.c.l.bf16 %v350
    %v367 = vunpack.c.l.bf16 %v351
    %v368 = vunpack.c.l.bf16 %v352
    %v369 = vunpack.c.l.bf16 %v353
    %v370 = vunpack.c.l.bf16 %v354
    %v371 = vunpack.c.l.bf16 %v355
    %v372 = vunpack.c.l.bf16 %v356
    %v373 = vunpack.c.l.bf16 %v357
    %v374 = vunpack.c.l.bf16 %v358
    %v375 = vunpack.c.l.bf16 %v359
    %v376 = vunpack.c.l.bf16 %v360
    %v377 = vunpack.c.l.bf16 %v361
    %v378 = vunpack.c.l.bf16 %v362
    %v379 = vadd.f32 %v331, %v363
    %v380 = vadd.f32 %v332, %v364
    %v381 = vadd.f32 %v333, %v365
    %v382 = vadd.f32 %v334, %v366
    %v383 = vadd.f32 %v335, %v367
    %v384 = vadd.f32 %v336, %v368
    %v385 = vadd.f32 %v337, %v369
    %v386 = vadd.f32 %v338, %v370
    %v387 = vadd.f32 %v339, %v371
    %v388 = vadd.f32 %v340, %v372
    %v389 = vadd.f32 %v341, %v373
    %v390 = vadd.f32 %v342, %v374
    %v391 = vadd.f32 %v343, %v375
    %v392 = vadd.f32 %v344, %v376
    %v393 = vadd.f32 %v345, %v377
    %v394 = vadd.f32 %v346, %v378
    %v395 = vld [vmem:[%s3] sm:$0xff]
    %v396 = vld [vmem:[%s3 + $0x8] sm:$0xff]
    %v397 = vld [vmem:[%s3 + $0x10] sm:$0xff]
    %v398 = vld [vmem:[%s3 + $0x18] sm:$0xff]
    %v399 = vld [vmem:[%s3 + $0x20] sm:$0xff]
    %v400 = vld [vmem:[%s3 + $0x28] sm:$0xff]
    %v401 = vld [vmem:[%s3 + $0x30] sm:$0xff]
    %v402 = vld [vmem:[%s3 + $0x38] sm:$0xff]
    %v403 = vld [vmem:[%s3 + $0x40] sm:$0xff]
    %v404 = vld [vmem:[%s3 + $0x48] sm:$0xff]
    %v405 = vld [vmem:[%s3 + $0x50] sm:$0xff]
    %v406 = vld [vmem:[%s3 + $0x58] sm:$0xff]
    %v407 = vld [vmem:[%s3 + $0x60] sm:$0xff]
    %v408 = vld [vmem:[%s3 + $0x68] sm:$0xff]
    %v409 = vld [vmem:[%s3 + $0x70] sm:$0xff]
    %v410 = vld [vmem:[%s3 + $0x78] sm:$0xff]
    %412 = vset.pattern.permute.xlu0 0
    %413 = vperm.xlu0 %412, %v395
    %v414 = vpop.permute.xlu0 %413
    %417 = vset.pattern.permute.xlu0 0
    %418 = vperm.xlu0 %417, %v396
    %v419 = vpop.permute.xlu0 %418
    %422 = vset.pattern.permute.xlu0 0
    %423 = vperm.xlu0 %422, %v397
    %v424 = vpop.permute.xlu0 %423
    %427 = vset.pattern.permute.xlu0 0
    %428 = vperm.xlu0 %427, %v398
    %v429 = vpop.permute.xlu0 %428
    %432 = vset.pattern.permute.xlu0 0
    %433 = vperm.xlu0 %432, %v399
    %v434 = vpop.permute.xlu0 %433
    %437 = vset.pattern.permute.xlu0 0
    %438 = vperm.xlu0 %437, %v400
    %v439 = vpop.permute.xlu0 %438
    %442 = vset.pattern.permute.xlu0 0
    %443 = vperm.xlu0 %442, %v401
    %v444 = vpop.permute.xlu0 %443
    %447 = vset.pattern.permute.xlu0 0
    %448 = vperm.xlu0 %447, %v402
    %v449 = vpop.permute.xlu0 %448
    %452 = vset.pattern.permute.xlu0 0
    %453 = vperm.xlu0 %452, %v403
    %v454 = vpop.permute.xlu0 %453
    %457 = vset.pattern.permute.xlu0 0
    %458 = vperm.xlu0 %457, %v404
    %v459 = vpop.permute.xlu0 %458
    %462 = vset.pattern.permute.xlu0 0
    %463 = vperm.xlu0 %462, %v405
    %v464 = vpop.permute.xlu0 %463
    %467 = vset.pattern.permute.xlu0 0
    %468 = vperm.xlu0 %467, %v406
    %v469 = vpop.permute.xlu0 %468
    %472 = vset.pattern.permute.xlu0 0
    %473 = vperm.xlu0 %472, %v407
    %v474 = vpop.permute.xlu0 %473
    %477 = vset.pattern.permute.xlu0 0
    %478 = vperm.xlu0 %477, %v408
    %v479 = vpop.permute.xlu0 %478
    %482 = vset.pattern.permute.xlu0 0
    %483 = vperm.xlu0 %482, %v409
    %v484 = vpop.permute.xlu0 %483
    %487 = vset.pattern.permute.xlu0 0
    %488 = vperm.xlu0 %487, %v410
    %v489 = vpop.permute.xlu0 %488
    %v491 = vmul.f32 %v379, %v414
    %v492 = vmul.f32 %v380, %v419
    %v493 = vmul.f32 %v381, %v424
    %v494 = vmul.f32 %v382, %v429
    %v495 = vmul.f32 %v383, %v434
    %v496 = vmul.f32 %v384, %v439
    %v497 = vmul.f32 %v385, %v444
    %v498 = vmul.f32 %v386, %v449
    %v499 = vmul.f32 %v387, %v454
    %v500 = vmul.f32 %v388, %v459
    %v501 = vmul.f32 %v389, %v464
    %v502 = vmul.f32 %v390, %v469
    %v503 = vmul.f32 %v391, %v474
    %v504 = vmul.f32 %v392, %v479
    %v505 = vmul.f32 %v393, %v484
    %v506 = vmul.f32 %v394, %v489
    %v507 = vld [vmem:[%s4] sm:$0x1]
    %v509 = vlaneseq
    %v510 = vshrl.u32 %v509, 7
    %v511 = vsub.s32 0, %v510
    %v512 = vrot.slane %v507, %v511
    %v514 = vadd.f32 %v491, %v512
    %v515 = vadd.f32 %v492, %v512
    %v516 = vadd.f32 %v493, %v512
    %v517 = vadd.f32 %v494, %v512
    %v518 = vadd.f32 %v495, %v512
    %v519 = vadd.f32 %v496, %v512
    %v520 = vadd.f32 %v497, %v512
    %v521 = vadd.f32 %v498, %v512
    %v522 = vadd.f32 %v499, %v512
    %v523 = vadd.f32 %v500, %v512
    %v524 = vadd.f32 %v501, %v512
    %v525 = vadd.f32 %v502, %v512
    %v526 = vadd.f32 %v503, %v512
    %v527 = vadd.f32 %v504, %v512
    %v528 = vadd.f32 %v505, %v512
    %v529 = vadd.f32 %v506, %v512
    %530 = vst [vmem:[%s9] sm:$0xff] %v514
    %531 = vst [vmem:[%s9 + $0x8] sm:$0xff] %v515
    %532 = vst [vmem:[%s9 + $0x10] sm:$0xff] %v516
    %533 = vst [vmem:[%s9 + $0x18] sm:$0xff] %v517
    %534 = vst [vmem:[%s9 + $0x20] sm:$0xff] %v518
    %535 = vst [vmem:[%s9 + $0x28] sm:$0xff] %v519
    %536 = vst [vmem:[%s9 + $0x30] sm:$0xff] %v520
    %537 = vst [vmem:[%s9 + $0x38] sm:$0xff] %v521
    %538 = vst [vmem:[%s9 + $0x40] sm:$0xff] %v522
    %539 = vst [vmem:[%s9 + $0x48] sm:$0xff] %v523
    %540 = vst [vmem:[%s9 + $0x50] sm:$0xff] %v524
    %541 = vst [vmem:[%s9 + $0x58] sm:$0xff] %v525
    %542 = vst [vmem:[%s9 + $0x60] sm:$0xff] %v526
    %543 = vst [vmem:[%s9 + $0x68] sm:$0xff] %v527
    %544 = vst [vmem:[%s9 + $0x70] sm:$0xff] %v528
    %545 = vst [vmem:[%s9 + $0x78] sm:$0xff] %v529
    %v546 = vmax.f32 %v514, 0.0
    %v547 = vmax.f32 %v515, 0.0
    %v548 = vmax.f32 %v516, 0.0
    %v549 = vmax.f32 %v517, 0.0
    %v550 = vmax.f32 %v518, 0.0
    %v551 = vmax.f32 %v519, 0.0
    %v552 = vmax.f32 %v520, 0.0
    %v553 = vmax.f32 %v521, 0.0
    %v554 = vmax.f32 %v522, 0.0
    %v555 = vmax.f32 %v523, 0.0
    %v556 = vmax.f32 %v524, 0.0
    %v557 = vmax.f32 %v525, 0.0
    %v558 = vmax.f32 %v526, 0.0
    %v559 = vmax.f32 %v527, 0.0
    %v560 = vmax.f32 %v528, 0.0
    %v561 = vmax.f32 %v529, 0.0
    %v562 = vpack.c.bf16 %v547, %v546
    %v563 = vpack.c.bf16 %v549, %v548
    %v564 = vpack.c.bf16 %v551, %v550
    %v565 = vpack.c.bf16 %v553, %v552
    %v566 = vpack.c.bf16 %v555, %v554
    %v567 = vpack.c.bf16 %v557, %v556
    %v568 = vpack.c.bf16 %v559, %v558
    %v569 = vpack.c.bf16 %v561, %v560
    %v570 = vld [vmem:[%s5] sm:$0xf]
    %v571 = vld [vmem:[%s5 + $0x4] sm:$0xf]
    %v572 = vld [vmem:[%s5 + $0x8] sm:$0xf]
    %v573 = vld [vmem:[%s5 + $0xc] sm:$0xf]
    %v574 = vld [vmem:[%s5 + $0x10] sm:$0xf]
    %v575 = vld [vmem:[%s5 + $0x14] sm:$0xf]
    %v576 = vld [vmem:[%s5 + $0x18] sm:$0xf]
    %v577 = vld [vmem:[%s5 + $0x1c] sm:$0xf]
    %v578 = vld [vmem:[%s5 + $0x20] sm:$0xf]
    %v579 = vld [vmem:[%s5 + $0x24] sm:$0xf]
    %v580 = vld [vmem:[%s5 + $0x28] sm:$0xf]
    %v581 = vld [vmem:[%s5 + $0x2c] sm:$0xf]
    %v582 = vld [vmem:[%s5 + $0x30] sm:$0xf]
    %v583 = vld [vmem:[%s5 + $0x34] sm:$0xf]
    %v584 = vld [vmem:[%s5 + $0x38] sm:$0xf]
    %v585 = vld [vmem:[%s5 + $0x3c] sm:$0xf]
    %v586 = vld [vmem:[%s6] sm:$0x1]
    %v588 = vlaneseq
    %v589 = vshrl.u32 %v588, 7
    %v590 = vsub.s32 0, %v589
    %v591 = vrot.slane %v586, %v590
    %v609 = vunpack.c.l.b16 %v570
    %v610 = vunpack.c.l.b16 %v571
    %v611 = vunpack.c.l.b16 %v572
    %v612 = vunpack.c.l.b16 %v573
    %v613 = vunpack.c.l.b16 %v574
    %v614 = vunpack.c.l.b16 %v575
    %v615 = vunpack.c.l.b16 %v576
    %v616 = vunpack.c.l.b16 %v577
    %v617 = vunpack.c.l.b16 %v578
    %v618 = vunpack.c.l.b16 %v579
    %v619 = vunpack.c.l.b16 %v580
    %v620 = vunpack.c.l.b16 %v581
    %v621 = vunpack.c.l.b16 %v582
    %v622 = vunpack.c.l.b16 %v583
    %v623 = vunpack.c.l.b16 %v584
    %v624 = vunpack.c.l.b16 %v585
    %v625 = vpack.c.b16 %v610, %v609
    %v626 = vpack.c.b16 %v612, %v611
    %v627 = vpack.c.b16 %v614, %v613
    %v628 = vpack.c.b16 %v616, %v615
    %v629 = vpack.c.b16 %v618, %v617
    %v630 = vpack.c.b16 %v620, %v619
    %v631 = vpack.c.b16 %v622, %v621
    %v632 = vpack.c.b16 %v624, %v623
    %641 = vmatprep.subr.bf16.mxu0 0
    %642 = vmatpush1.bf16.msra.mxu0 %v632
    %643 = vmatprep.subr.bf16.mxu0 0
    %644 = vmatpush1.bf16.msra.mxu0 %v631
    %645 = vmatprep.subr.bf16.mxu0 0
    %646 = vmatpush1.bf16.msra.mxu0 %v630
    %647 = vmatprep.subr.bf16.mxu0 0
    %648 = vmatpush1.bf16.msra.mxu0 %v629
    %649 = vmatprep.subr.bf16.mxu0 0
    %650 = vmatpush1.bf16.msra.mxu0 %v628
    %651 = vmatprep.subr.bf16.mxu0 0
    %652 = vmatpush1.bf16.msra.mxu0 %v627
    %653 = vmatprep.subr.bf16.mxu0 0
    %654 = vmatpush1.bf16.msra.mxu0 %v626
    %655 = vmatprep.subr.bf16.mxu0 0
    %656 = vmatpush1.bf16.msra.mxu0 %v625
    %657 = vmatprep.subr.bf16.mxu0 0
    %658 = vmatpush2.bf16.msra.mxu0 0
    %659 = vmatprep.subr.bf16.mxu0 0
    %660 = vmatpush2.bf16.msra.mxu0 0
    %661 = vmatprep.subr.bf16.mxu0 0
    %662 = vmatpush2.bf16.msra.mxu0 0
    %663 = vmatprep.subr.bf16.mxu0 0
    %664 = vmatpush2.bf16.msra.mxu0 0
    %665 = vmatprep.subr.bf16.mxu0 0
    %666 = vmatpush2.bf16.msra.mxu0 0
    %667 = vmatprep.subr.bf16.mxu0 0
    %668 = vmatpush2.bf16.msra.mxu0 0
    %669 = vmatprep.subr.bf16.mxu0 0
    %670 = vmatpush2.bf16.msra.mxu0 0
    %671 = vmatprep.subr.bf16.mxu0 0
    %672 = vmatpush2.bf16.msra.mxu0 0
    %673 = vmatprep.mubr.bf16.mxu0 0
    %674 = vmatmul.mubr.bf16.gmra.mxu0 %v562
    %v675 = vpop.f32.mrf.mxu0
    %v676 = vadd.f32 %v591, %v675
    %v677 = vpop.f32.mrf.mxu0
    %v678 = vpop.f32.mrf.mxu0
    %v679 = vadd.f32 %v591, %v678
    %v680 = vpop.f32.mrf.mxu0
    %681 = vmatprep.mubr.bf16.mxu0 0
    %682 = vmatmul.mubr.bf16.gmra.mxu0 %v563
    %v683 = vpop.f32.mrf.mxu0
    %v684 = vadd.f32 %v591, %v683
    %v685 = vpop.f32.mrf.mxu0
    %v686 = vpop.f32.mrf.mxu0
    %v687 = vadd.f32 %v591, %v686
    %v688 = vpop.f32.mrf.mxu0
    %689 = vmatprep.mubr.bf16.mxu0 0
    %690 = vmatmul.mubr.bf16.gmra.mxu0 %v564
    %v691 = vpop.f32.mrf.mxu0
    %v692 = vadd.f32 %v591, %v691
    %v693 = vpop.f32.mrf.mxu0
    %v694 = vpop.f32.mrf.mxu0
    %v695 = vadd.f32 %v591, %v694
    %v696 = vpop.f32.mrf.mxu0
    %697 = vmatprep.mubr.bf16.mxu0 0
    %698 = vmatmul.mubr.bf16.gmra.mxu0 %v565
    %v699 = vpop.f32.mrf.mxu0
    %v700 = vadd.f32 %v591, %v699
    %v701 = vpop.f32.mrf.mxu0
    %v702 = vpop.f32.mrf.mxu0
    %v703 = vadd.f32 %v591, %v702
    %v704 = vpop.f32.mrf.mxu0
    %705 = vmatprep.mubr.bf16.mxu0 0
    %706 = vmatmul.mubr.bf16.gmra.mxu0 %v566
    %v707 = vpop.f32.mrf.mxu0
    %v708 = vadd.f32 %v591, %v707
    %v709 = vpop.f32.mrf.mxu0
    %v710 = vpop.f32.mrf.mxu0
    %v711 = vadd.f32 %v591, %v710
    %v712 = vpop.f32.mrf.mxu0
    %713 = vmatprep.mubr.bf16.mxu0 0
    %714 = vmatmul.mubr.bf16.gmra.mxu0 %v567
    %v715 = vpop.f32.mrf.mxu0
    %v716 = vadd.f32 %v591, %v715
    %v717 = vpop.f32.mrf.mxu0
    %v718 = vpop.f32.mrf.mxu0
    %v719 = vadd.f32 %v591, %v718
    %v720 = vpop.f32.mrf.mxu0
    %721 = vmatprep.mubr.bf16.mxu0 0
    %722 = vmatmul.mubr.bf16.gmra.mxu0 %v568
    %v723 = vpop.f32.mrf.mxu0
    %v724 = vadd.f32 %v591, %v723
    %v725 = vpop.f32.mrf.mxu0
    %v726 = vpop.f32.mrf.mxu0
    %v727 = vadd.f32 %v591, %v726
    %v728 = vpop.f32.mrf.mxu0
    %729 = vmatprep.mubr.bf16.mxu0 0
    %730 = vmatmul.mubr.bf16.gmra.mxu0 %v569
    %v731 = vpop.f32.mrf.mxu0
    %v732 = vadd.f32 %v591, %v731
    %v733 = vpop.f32.mrf.mxu0
    %v734 = vpop.f32.mrf.mxu0
    %v735 = vadd.f32 %v591, %v734
    %v736 = vpop.f32.mrf.mxu0
    %737 = vdwg.mxu0
    %v738 = vpack.c.bf16 %v679, %v676
    %v739 = vpack.c.bf16 %v687, %v684
    %v740 = vpack.c.bf16 %v695, %v692
    %v741 = vpack.c.bf16 %v703, %v700
    %v742 = vpack.c.bf16 %v711, %v708
    %v743 = vpack.c.bf16 %v719, %v716
    %v744 = vpack.c.bf16 %v727, %v724
    %v745 = vpack.c.bf16 %v735, %v732
    %v746 = vld [vmem:[%s7] sm:$0xf]
    %v747 = vld [vmem:[%s7 + $0x4] sm:$0xf]
    %v748 = vld [vmem:[%s7 + $0x8] sm:$0xf]
    %v749 = vld [vmem:[%s7 + $0xc] sm:$0xf]
    %v750 = vld [vmem:[%s7 + $0x10] sm:$0xf]
    %v751 = vld [vmem:[%s7 + $0x14] sm:$0xf]
    %v752 = vld [vmem:[%s7 + $0x18] sm:$0xf]
    %v753 = vld [vmem:[%s7 + $0x1c] sm:$0xf]
    %v754 = vld [vmem:[%s7 + $0x20] sm:$0xf]
    %v755 = vld [vmem:[%s7 + $0x24] sm:$0xf]
    %v756 = vld [vmem:[%s7 + $0x28] sm:$0xf]
    %v757 = vld [vmem:[%s7 + $0x2c] sm:$0xf]
    %v758 = vld [vmem:[%s7 + $0x30] sm:$0xf]
    %v759 = vld [vmem:[%s7 + $0x34] sm:$0xf]
    %v760 = vld [vmem:[%s7 + $0x38] sm:$0xf]
    %v761 = vld [vmem:[%s7 + $0x3c] sm:$0xf]
    %v762 = vld [vmem:[%s8] sm:$0x1]
    %v764 = vlaneseq
    %v765 = vshrl.u32 %v764, 7
    %v766 = vsub.s32 0, %v765
    %v767 = vrot.slane %v762, %v766
    %v785 = vunpack.c.l.b16 %v746
    %v786 = vunpack.c.l.b16 %v747
    %v787 = vunpack.c.l.b16 %v748
    %v788 = vunpack.c.l.b16 %v749
    %v789 = vunpack.c.l.b16 %v750
    %v790 = vunpack.c.l.b16 %v751
    %v791 = vunpack.c.l.b16 %v752
    %v792 = vunpack.c.l.b16 %v753
    %v793 = vunpack.c.l.b16 %v754
    %v794 = vunpack.c.l.b16 %v755
    %v795 = vunpack.c.l.b16 %v756
    %v796 = vunpack.c.l.b16 %v757
    %v797 = vunpack.c.l.b16 %v758
    %v798 = vunpack.c.l.b16 %v759
    %v799 = vunpack.c.l.b16 %v760
    %v800 = vunpack.c.l.b16 %v761
    %v801 = vpack.c.b16 %v786, %v785
    %v802 = vpack.c.b16 %v788, %v787
    %v803 = vpack.c.b16 %v790, %v789
    %v804 = vpack.c.b16 %v792, %v791
    %v805 = vpack.c.b16 %v794, %v793
    %v806 = vpack.c.b16 %v796, %v795
    %v807 = vpack.c.b16 %v798, %v797
    %v808 = vpack.c.b16 %v800, %v799
    %817 = vmatprep.subr.bf16.mxu0 0
    %818 = vmatpush1.bf16.msra.mxu0 %v808
    %819 = vmatprep.subr.bf16.mxu0 0
    %820 = vmatpush1.bf16.msra.mxu0 %v807
    %821 = vmatprep.subr.bf16.mxu0 0
    %822 = vmatpush1.bf16.msra.mxu0 %v806
    %823 = vmatprep.subr.bf16.mxu0 0
    %824 = vmatpush1.bf16.msra.mxu0 %v805
    %825 = vmatprep.subr.bf16.mxu0 0
    %826 = vmatpush1.bf16.msra.mxu0 %v804
    %827 = vmatprep.subr.bf16.mxu0 0
    %828 = vmatpush1.bf16.msra.mxu0 %v803
    %829 = vmatprep.subr.bf16.mxu0 0
    %830 = vmatpush1.bf16.msra.mxu0 %v802
    %831 = vmatprep.subr.bf16.mxu0 0
    %832 = vmatpush1.bf16.msra.mxu0 %v801
    %833 = vmatprep.subr.bf16.mxu0 0
    %834 = vmatpush2.bf16.msra.mxu0 0
    %835 = vmatprep.subr.bf16.mxu0 0
    %836 = vmatpush2.bf16.msra.mxu0 0
    %837 = vmatprep.subr.bf16.mxu0 0
    %838 = vmatpush2.bf16.msra.mxu0 0
    %839 = vmatprep.subr.bf16.mxu0 0
    %840 = vmatpush2.bf16.msra.mxu0 0
    %841 = vmatprep.subr.bf16.mxu0 0
    %842 = vmatpush2.bf16.msra.mxu0 0
    %843 = vmatprep.subr.bf16.mxu0 0
    %844 = vmatpush2.bf16.msra.mxu0 0
    %845 = vmatprep.subr.bf16.mxu0 0
    %846 = vmatpush2.bf16.msra.mxu0 0
    %847 = vmatprep.subr.bf16.mxu0 0
    %848 = vmatpush2.bf16.msra.mxu0 0
    %849 = vmatprep.mubr.bf16.mxu0 0
    %850 = vmatmul.mubr.bf16.gmra.mxu0 %v738
    %v851 = vpop.f32.mrf.mxu0
    %v852 = vadd.f32 %v767, %v851
    %v853 = vpop.f32.mrf.mxu0
    %v854 = vpop.f32.mrf.mxu0
    %v855 = vadd.f32 %v767, %v854
    %v856 = vpop.f32.mrf.mxu0
    %857 = vmatprep.mubr.bf16.mxu0 0
    %858 = vmatmul.mubr.bf16.gmra.mxu0 %v739
    %v859 = vpop.f32.mrf.mxu0
    %v860 = vadd.f32 %v767, %v859
    %v861 = vpop.f32.mrf.mxu0
    %v862 = vpop.f32.mrf.mxu0
    %v863 = vadd.f32 %v767, %v862
    %v864 = vpop.f32.mrf.mxu0
    %865 = vmatprep.mubr.bf16.mxu0 0
    %866 = vmatmul.mubr.bf16.gmra.mxu0 %v740
    %v867 = vpop.f32.mrf.mxu0
    %v868 = vadd.f32 %v767, %v867
    %v869 = vpop.f32.mrf.mxu0
    %v870 = vpop.f32.mrf.mxu0
    %v871 = vadd.f32 %v767, %v870
    %v872 = vpop.f32.mrf.mxu0
    %873 = vmatprep.mubr.bf16.mxu0 0
    %874 = vmatmul.mubr.bf16.gmra.mxu0 %v741
    %v875 = vpop.f32.mrf.mxu0
    %v876 = vadd.f32 %v767, %v875
    %v877 = vpop.f32.mrf.mxu0
    %v878 = vpop.f32.mrf.mxu0
    %v879 = vadd.f32 %v767, %v878
    %v880 = vpop.f32.mrf.mxu0
    %881 = vmatprep.mubr.bf16.mxu0 0
    %882 = vmatmul.mubr.bf16.gmra.mxu0 %v742
    %v883 = vpop.f32.mrf.mxu0
    %v884 = vadd.f32 %v767, %v883
    %v885 = vpop.f32.mrf.mxu0
    %v886 = vpop.f32.mrf.mxu0
    %v887 = vadd.f32 %v767, %v886
    %v888 = vpop.f32.mrf.mxu0
    %889 = vmatprep.mubr.bf16.mxu0 0
    %890 = vmatmul.mubr.bf16.gmra.mxu0 %v743
    %v891 = vpop.f32.mrf.mxu0
    %v892 = vadd.f32 %v767, %v891
    %v893 = vpop.f32.mrf.mxu0
    %v894 = vpop.f32.mrf.mxu0
    %v895 = vadd.f32 %v767, %v894
    %v896 = vpop.f32.mrf.mxu0
    %897 = vmatprep.mubr.bf16.mxu0 0
    %898 = vmatmul.mubr.bf16.gmra.mxu0 %v744
    %v899 = vpop.f32.mrf.mxu0
    %v900 = vadd.f32 %v767, %v899
    %v901 = vpop.f32.mrf.mxu0
    %v902 = vpop.f32.mrf.mxu0
    %v903 = vadd.f32 %v767, %v902
    %v904 = vpop.f32.mrf.mxu0
    %905 = vmatprep.mubr.bf16.mxu0 0
    %906 = vmatmul.mubr.bf16.gmra.mxu0 %v745
    %v907 = vpop.f32.mrf.mxu0
    %v908 = vadd.f32 %v767, %v907
    %v909 = vpop.f32.mrf.mxu0
    %v910 = vpop.f32.mrf.mxu0
    %v911 = vadd.f32 %v767, %v910
    %v912 = vpop.f32.mrf.mxu0
    %913 = vdwg.mxu0
    %v914 = vxor.u32 %v852, 2147483648
    %v915 = vxor.u32 %v855, 2147483648
    %v916 = vxor.u32 %v860, 2147483648
    %v917 = vxor.u32 %v863, 2147483648
    %v918 = vxor.u32 %v868, 2147483648
    %v919 = vxor.u32 %v871, 2147483648
    %v920 = vxor.u32 %v876, 2147483648
    %v921 = vxor.u32 %v879, 2147483648
    %v922 = vxor.u32 %v884, 2147483648
    %v923 = vxor.u32 %v887, 2147483648
    %v924 = vxor.u32 %v892, 2147483648
    %v925 = vxor.u32 %v895, 2147483648
    %v926 = vxor.u32 %v900, 2147483648
    %v927 = vxor.u32 %v903, 2147483648
    %v928 = vxor.u32 %v908, 2147483648
    %v929 = vxor.u32 %v911, 2147483648
    %v930 = vmul.f32 %v914, 1.442695
    %v931 = vpow.pop %v930
    %v932 = vmul.f32 %v915, 1.442695
    %v933 = vpow.pop %v932
    %v934 = vmul.f32 %v916, 1.442695
    %v935 = vpow.pop %v934
    %v936 = vmul.f32 %v917, 1.442695
    %v937 = vpow.pop %v936
    %v938 = vmul.f32 %v918, 1.442695
    %v939 = vpow.pop %v938
    %v940 = vmul.f32 %v919, 1.442695
    %v941 = vpow.pop %v940
    %v942 = vmul.f32 %v920, 1.442695
    %v943 = vpow.pop %v942
    %v944 = vmul.f32 %v921, 1.442695
    %v945 = vpow.pop %v944
    %v946 = vmul.f32 %v922, 1.442695
    %v947 = vpow.pop %v946
    %v948 = vmul.f32 %v923, 1.442695
    %v949 = vpow.pop %v948
    %v950 = vmul.f32 %v924, 1.442695
    %v951 = vpow.pop %v950
    %v952 = vmul.f32 %v925, 1.442695
    %v953 = vpow.pop %v952
    %v954 = vmul.f32 %v926, 1.442695
    %v955 = vpow.pop %v954
    %v956 = vmul.f32 %v927, 1.442695
    %v957 = vpow.pop %v956
    %v958 = vmul.f32 %v928, 1.442695
    %v959 = vpow.pop %v958
    %v960 = vmul.f32 %v929, 1.442695
    %v961 = vpow.pop %v960
    %v962 = vadd.f32 %v931, 1.0
    %v963 = vadd.f32 %v933, 1.0
    %v964 = vadd.f32 %v935, 1.0
    %v965 = vadd.f32 %v937, 1.0
    %v966 = vadd.f32 %v939, 1.0
    %v967 = vadd.f32 %v941, 1.0
    %v968 = vadd.f32 %v943, 1.0
    %v969 = vadd.f32 %v945, 1.0
    %v970 = vadd.f32 %v947, 1.0
    %v971 = vadd.f32 %v949, 1.0
    %v972 = vadd.f32 %v951, 1.0
    %v973 = vadd.f32 %v953, 1.0
    %v974 = vadd.f32 %v955, 1.0
    %v975 = vadd.f32 %v957, 1.0
    %v976 = vadd.f32 %v959, 1.0
    %v977 = vadd.f32 %v961, 1.0
    %v978 = vrcp.pop %v962
    %v979 = vmul.f32 1.0, %v978
    %v980 = vrcp.pop %v963
    %v981 = vmul.f32 1.0, %v980
    %v982 = vrcp.pop %v964
    %v983 = vmul.f32 1.0, %v982
    %v984 = vrcp.pop %v965
    %v985 = vmul.f32 1.0, %v984
    %v986 = vrcp.pop %v966
    %v987 = vmul.f32 1.0, %v986
    %v988 = vrcp.pop %v967
    %v989 = vmul.f32 1.0, %v988
    %v990 = vrcp.pop %v968
    %v991 = vmul.f32 1.0, %v990
    %v992 = vrcp.pop %v969
    %v993 = vmul.f32 1.0, %v992
    %v994 = vrcp.pop %v970
    %v995 = vmul.f32 1.0, %v994
    %v996 = vrcp.pop %v971
    %v997 = vmul.f32 1.0, %v996
    %v998 = vrcp.pop %v972
    %v999 = vmul.f32 1.0, %v998
    %v1000 = vrcp.pop %v973
    %v1001 = vmul.f32 1.0, %v1000
    %v1002 = vrcp.pop %v974
    %v1003 = vmul.f32 1.0, %v1002
    %v1004 = vrcp.pop %v975
    %v1005 = vmul.f32 1.0, %v1004
    %v1006 = vrcp.pop %v976
    %v1007 = vmul.f32 1.0, %v1006
    %v1008 = vrcp.pop %v977
    %v1009 = vmul.f32 1.0, %v1008
    %1010 = vst [vmem:[%s10] sm:$0xff] %v979
    %1011 = vst [vmem:[%s10 + $0x8] sm:$0xff] %v981
    %1012 = vst [vmem:[%s10 + $0x10] sm:$0xff] %v983
    %1013 = vst [vmem:[%s10 + $0x18] sm:$0xff] %v985
    %1014 = vst [vmem:[%s10 + $0x20] sm:$0xff] %v987
    %1015 = vst [vmem:[%s10 + $0x28] sm:$0xff] %v989
    %1016 = vst [vmem:[%s10 + $0x30] sm:$0xff] %v991
    %1017 = vst [vmem:[%s10 + $0x38] sm:$0xff] %v993
    %1018 = vst [vmem:[%s10 + $0x40] sm:$0xff] %v995
    %1019 = vst [vmem:[%s10 + $0x48] sm:$0xff] %v997
    %1020 = vst [vmem:[%s10 + $0x50] sm:$0xff] %v999
    %1021 = vst [vmem:[%s10 + $0x58] sm:$0xff] %v1001
    %1022 = vst [vmem:[%s10 + $0x60] sm:$0xff] %v1003
    %1023 = vst [vmem:[%s10 + $0x68] sm:$0xff] %v1005
    %1024 = vst [vmem:[%s10 + $0x70] sm:$0xff] %v1007
    %1025 = vst [vmem:[%s10 + $0x78] sm:$0xff] %v1009
  $region45: #{gnn_stack_forward.5} parent=0 // pred_fallthru
    _
  // Predicated region
  $region46: #{gnn_stack_forward.5} parent=0 // pred_check
    _
  $region47: #{gnn_stack_forward.5} parent=0 // pred_check_branch
    %1027 = sbr.rel (0) target = $region49
  $region48: #{gnn_stack_forward.5} parent=0 // pred_region
    _
  $region49: #{gnn_stack_forward.5} parent=0 // pred_fallthru
    _
  // Predicated region
  $region50: #{gnn_stack_forward.5} parent=0 // pred_check
    _
  $region51: #{gnn_stack_forward.5} parent=0 // pred_check_branch
    %1029 = sbr.rel (0) target = $region53
  $region52: #{gnn_stack_forward.5} parent=0 // pred_region
    _
  $region53: #{gnn_stack_forward.5} parent=0 // pred_fallthru
    _
  // Predicated region
  $region54: #{gnn_stack_forward.5} parent=0 // pred_check
    _
  $region55: #{gnn_stack_forward.5} parent=0 // pred_check_branch
    %1031 = sbr.rel (0) target = $region57
  $region56: #{gnn_stack_forward.5} parent=0 // pred_region
    _
  $region57: #{gnn_stack_forward.5} parent=0 // pred_fallthru
    _
  // Predicated region
  $region58: #{gnn_stack_forward.5} parent=0 // pred_check
    _
  $region59: #{gnn_stack_forward.5} parent=0 // pred_check_branch
    %1033 = sbr.rel (0) target = $region61
  $region60: #{gnn_stack_forward.5} parent=0 // pred_region
    _
  $region61: #{gnn_stack_forward.5} parent=0 // pred_fallthru
    _

</llo_original>
